<compile_context>
chip_gen: v6e
topology: v6e:2x2x1
jax: 0.10.0
libtpu: 0.0.40
codegen_flags: <defaults>
</compile_context>

<pallas_src>
import functools

import numpy as np

import jax
import jax.numpy as jnp
from jax.experimental import pallas as pl
from jax.experimental.pallas import tpu as pltpu

H = W = 4          # 2048 board spatial size
KH = KW = 3        # conv kernel size
CIN_RAW = 17       # one-hot planes produced by to_3d()
CIN_PAD = 32       # pad 17 -> 32 so layer-0 K is a clean 512
OUT_PAD = 128      # lane-dense output width (col 0 = actor, col 1 = critic)
NB = 8             # batch rows per grid step (fills the 8 sublanes)


# ------------------------------ Fused kernel ---------------------------------

def _make_fused_kernel(layer_num):
    def kernel(*refs):
        # refs = (x, w_0, shift_0, ..., w_{L-1}, shift_{L-1}, w_heads, out)
        x_ref = refs[0]
        wh_ref = refs[1 + 2 * layer_num]
        out_ref = refs[2 + 2 * layer_num]

        # Lane-dense activation slab (NB, H*W*C); bf16 operands for the MXU,
        # f32 accumulation + f32 elementwise epilogue (safe on v5e's VPU).
        h = x_ref[...].astype(jnp.bfloat16)
        for i in range(layer_num):
            w_ref = refs[1 + 2 * i]        # (H*W*cin, H*W*C) folded conv+pad+BNscale
            s_ref = refs[2 + 2 * i]        # (1, H*W*C) folded BN shift
            acc = jnp.dot(h, w_ref[...], preferred_element_type=jnp.float32)
            h = jnp.maximum(acc + s_ref[...], 0.0).astype(jnp.bfloat16)

        # Actor + critic 4x4 heads as one dot; output padded to 128 lanes so
        # the single store is unmasked.
        out_ref[...] = jnp.dot(h, wh_ref[...], preferred_element_type=jnp.float32)

    return kernel


# ------------------------------- Parameters -----------------------------------

def init_params(key, layer_num, channel_num):
    """Deterministic synthetic parameters (shapes mirror the PyTorch module)."""
    params = {"convs": [], "bns": []}
    in_ch = CIN_RAW
    for _ in range(layer_num):
        key, k = jax.random.split(key)
        w_oihw = 0.05 * jax.random.normal(k, (channel_num, in_ch, 3, 3),
                                          jnp.float32)
        params["convs"].append(w_oihw)
        key, kg, kb, km, kv = jax.random.split(key, 5)
        gamma = 1.0 + 0.1 * jax.random.normal(kg, (channel_num,), jnp.float32)
        beta = 0.1 * jax.random.normal(kb, (channel_num,), jnp.float32)
        rmean = 0.05 * jax.random.normal(km, (channel_num,), jnp.float32)
        rvar = 1.0 + 0.1 * jax.random.uniform(kv, (channel_num,), jnp.float32)
        params["bns"].append((gamma, beta, rmean, rvar))
        in_ch = channel_num
    key, ka, kc = jax.random.split(key, 3)
    params["actor_last"] = 0.05 * jax.random.normal(
        ka, (1, channel_num, 4, 4), jnp.float32)
    params["critic_last"] = 0.05 * jax.random.normal(
        kc, (1, channel_num, 4, 4), jnp.float32)
    return params


def _fold_conv_weight(w_hwio, cin, cout):
    """3x3 same-padding conv on a 4x4 grid -> dense (H*W*cin, H*W*cout) matrix.

    Row index  = (hi*W + wi)*cin  + ci   (input  spatial position, channel)
    Col index  = (ho*W + wo)*cout + co   (output spatial position, channel)
    Taps falling on the zero halo are simply omitted (stay zero).
    """
    wf = np.zeros((H * W * cin, H * W * cout), np.float32)
    for ho in range(H):
        for wo in range(W):
            ocol = (ho * W + wo) * cout
            for kh in range(KH):
                for kw in range(KW):
                    hi = ho + kh - 1
                    wi = wo + kw - 1
                    if 0 <= hi < H and 0 <= wi < W:
                        irow = (hi * W + wi) * cin
                        wf[irow:irow + cin, ocol:ocol + cout] = w_hwio[kh, kw]
    return wf


def prepare_params(params, layer_num, channel_num, use_bn=True, eps=1e-5):
    """One-time folding: pad + im2col + BN scale into per-layer dense matrices."""
    flat = []
    for i in range(layer_num):
        w_oihw = np.asarray(params["convs"][i], np.float32)   # (C, cin, 3, 3)
        cin = w_oihw.shape[1]
        w_hwio = np.transpose(w_oihw, (2, 3, 1, 0))           # (3, 3, cin, C)
        if use_bn:
            gamma, beta, rmean, rvar = [np.asarray(a, np.float32)
                                        for a in params["bns"][i]]
            scale = gamma / np.sqrt(rvar + eps)
            shift = beta - rmean * scale
        else:
            scale = np.ones((channel_num,), np.float32)
            shift = np.zeros((channel_num,), np.float32)
        w_hwio = w_hwio * scale[None, None, None, :]          # fold BN scale
        if i == 0 and cin < CIN_PAD:
            w_hwio = np.pad(w_hwio,
                            ((0, 0), (0, 0), (0, CIN_PAD - cin), (0, 0)))
            cin = CIN_PAD
        wf = _fold_conv_weight(w_hwio, cin, channel_num)      # (HW*cin, HW*C)
        shift_row = np.tile(shift, H * W)[None, :]            # (1, HW*C)
        flat += [jnp.asarray(wf, jnp.bfloat16),
                 jnp.asarray(shift_row, jnp.float32)]

    def head_flat(w):  # (1, C, 4, 4) OIHW -> (H*W*C, 1), rows ordered (h, w, c)
        w = np.asarray(w, np.float32)
        return np.transpose(w, (2, 3, 1, 0)).reshape(H * W * channel_num, 1)

    wh = np.zeros((H * W * channel_num, OUT_PAD), np.float32)
    wh[:, 0:1] = head_flat(params["actor_last"])
    wh[:, 1:2] = head_flat(params["critic_last"])
    flat.append(jnp.asarray(wh, jnp.bfloat16))
    return tuple(flat)


# -------------------------------- Forward -------------------------------------

@functools.partial(jax.jit, static_argnums=(2, 3))
def afterstate_actor_critic_forward(x_nchw, kernel_params, layer_num,
                                    channel_num):
    """Equivalent of AfterstateActorCritic.compute_actor_critic_values.

    x_nchw: (N, 17, 4, 4) float32 (PyTorch NCHW convention)
    returns (actor (N, 1), critic (N, 1))
    """
    assert layer_num >= 1
    n = x_nchw.shape[0]
    cin = x_nchw.shape[1]

    # NCHW -> lane-dense (N, H*W*CIN_PAD) slab, channel-major within a pixel.
    x = jnp.transpose(x_nchw.astype(jnp.float32), (0, 2, 3, 1))   # (N, H, W, C)
    x = jnp.pad(x, ((0, 0), (0, 0), (0, 0), (0, CIN_PAD - cin)))
    x = x.reshape(n, H * W * CIN_PAD)

    # Pad the batch to a multiple of NB so every grid block is full.
    num_blocks = pl.cdiv(n, NB)
    n_pad = num_blocks * NB
    if n_pad != n:
        x = jnp.pad(x, ((0, n_pad - n), (0, 0)))

    k0 = H * W * CIN_PAD
    kc = H * W * channel_num

    in_specs = [pl.BlockSpec((NB, k0), lambda b: (b, 0))]         # activations
    for i in range(layer_num):
        k_in = k0 if i == 0 else kc
        in_specs.append(pl.BlockSpec((k_in, kc), lambda b: (0, 0)))  # weights
        in_specs.append(pl.BlockSpec((1, kc), lambda b: (0, 0)))     # shift
    in_specs.append(pl.BlockSpec((kc, OUT_PAD), lambda b: (0, 0)))   # heads

    out = pl.pallas_call(
        _make_fused_kernel(layer_num),
        out_shape=jax.ShapeDtypeStruct((n_pad, OUT_PAD), jnp.float32),
        grid=(num_blocks,),
        in_specs=in_specs,
        out_specs=pl.BlockSpec((NB, OUT_PAD), lambda b: (b, 0)),
        compiler_params=pltpu.CompilerParams(
            dimension_semantics=("parallel",)),
    )(x, *kernel_params)

    return out[:n, 0:1], out[:n, 1:2]


# ------------------------------- Reference ------------------------------------

def _reference(x_nchw, params, layer_num, use_bn=True):
    eps = 1e-5
    hp = jax.lax.Precision.HIGHEST
    h = x_nchw.astype(jnp.float32)
    for i in range(layer_num):
        w = params["convs"][i]
        h = jax.lax.conv_general_dilated(
            h, w, window_strides=(1, 1), padding=((1, 1), (1, 1)),
            dimension_numbers=("NCHW", "OIHW", "NCHW"), precision=hp)
        if use_bn:
            gamma, beta, rmean, rvar = params["bns"][i]
            scale = (gamma / jnp.sqrt(rvar + eps)).reshape(1, -1, 1, 1)
            shift = (beta - rmean * gamma / jnp.sqrt(rvar + eps)
                     ).reshape(1, -1, 1, 1)
            h = h * scale + shift
        h = jnp.maximum(h, 0.0)
    a = jax.lax.conv_general_dilated(
        h, params["actor_last"], (1, 1), "VALID",
        dimension_numbers=("NCHW", "OIHW", "NCHW"), precision=hp)
    c = jax.lax.conv_general_dilated(
        h, params["critic_last"], (1, 1), "VALID",
        dimension_numbers=("NCHW", "OIHW", "NCHW"), precision=hp)
    return a.reshape(-1, 1), c.reshape(-1, 1)


# --------------------------------- Main ----------------------------------------

if __name__ == "__main__":
    layer_num = 2
    channel_num = 32
    use_bn = True
    # 4 board states x 4 afterstates (up/right/down/left) per state, as in
    # evaluate(); batching multiple boards per call fills sublanes & the grid.
    N = 16

    key = jax.random.PRNGKey(0)
    key, kboard = jax.random.split(key)
    # Boards encoded like to_3d(): one-hot over 17 planes per cell.
    cell_ids = jax.random.randint(kboard, (N, H, W), 0, CIN_RAW)
    x_nchw = jnp.transpose(
        jax.nn.one_hot(cell_ids, CIN_RAW, dtype=jnp.float32), (0, 3, 1, 2))

    params = init_params(jax.random.PRNGKey(0), layer_num, channel_num)
    kparams = prepare_params(params, layer_num, channel_num, use_bn)

    actor_out, critic_out = afterstate_actor_critic_forward(
        x_nchw, kparams, layer_num, channel_num)
    actor_out = jax.block_until_ready(actor_out)
    critic_out = jax.block_until_ready(critic_out)

    ref_a, ref_c = _reference(x_nchw, params, layer_num, use_bn)
    assert actor_out.shape == (N, 1) and critic_out.shape == (N, 1)
    assert jnp.allclose(actor_out, ref_a, atol=1e-2, rtol=1e-2)
    assert jnp.allclose(critic_out, ref_c, atol=1e-2, rtol=1e-2)

    print("KERNEL_OK")
</pallas_src>

<mosaic_0001>
module attributes {stable_mosaic.version = 11 : i64} {
  func.func @kernel(%arg0: i32, %arg1: memref<8x512xf32, #tpu.memory_space<vmem>>, %arg2: memref<512x512xbf16, #tpu.memory_space<vmem>>, %arg3: memref<1x512xf32, #tpu.memory_space<vmem>>, %arg4: memref<512x512xbf16, #tpu.memory_space<vmem>>, %arg5: memref<1x512xf32, #tpu.memory_space<vmem>>, %arg6: memref<512x128xbf16, #tpu.memory_space<vmem>>, %arg7: memref<8x128xf32, #tpu.memory_space<vmem>>) attributes {dimension_semantics = [#tpu.dimension_semantics<parallel>], iteration_bounds = array<i64: 2>, scalar_prefetch = 0 : i64, scratch_operands = 0 : i64, tpu.core_type = #tpu.core_type<tc>, window_params = [{transform_indices = @transform_0, window_bounds = array<i64: 8, 512>}, {pipeline_mode = #tpu.pipeline_mode<synchronous>, transform_indices = @transform_1, window_bounds = array<i64: 512, 512>}, {pipeline_mode = #tpu.pipeline_mode<synchronous>, transform_indices = @transform_2, window_bounds = array<i64: 1, 512>}, {pipeline_mode = #tpu.pipeline_mode<synchronous>, transform_indices = @transform_3, window_bounds = array<i64: 512, 512>}, {pipeline_mode = #tpu.pipeline_mode<synchronous>, transform_indices = @transform_4, window_bounds = array<i64: 1, 512>}, {pipeline_mode = #tpu.pipeline_mode<synchronous>, transform_indices = @transform_5, window_bounds = array<i64: 512, 128>}, {transform_indices = @transform_6, window_bounds = array<i64: 8, 128>}]} {
    %c0 = arith.constant 0 : index
    %c0_0 = arith.constant 0 : index
    %0 = vector.load %arg1[%c0, %c0_0] : memref<8x512xf32, #tpu.memory_space<vmem>>, vector<8x512xf32>
    %1 = arith.truncf %0 : vector<8x512xf32> to vector<8x512xbf16>
    %c0_1 = arith.constant 0 : index
    %c0_2 = arith.constant 0 : index
    %2 = vector.load %arg2[%c0_1, %c0_2] : memref<512x512xbf16, #tpu.memory_space<vmem>>, vector<512x512xbf16>
    %cst = arith.constant dense<0.000000e+00> : vector<8x512xf32>
    %3 = tpu.matmul %1, %2, %cst {dimension_numbers = #tpu.dot_dimension_numbers<[1], [0], [0], [1], [0, 0, 1, 1], [], []>} : vector<8x512xbf16>, vector<512x512xbf16>, vector<8x512xf32> -> vector<8x512xf32>
    %c0_3 = arith.constant 0 : index
    %c0_4 = arith.constant 0 : index
    %4 = vector.load %arg3[%c0_3, %c0_4] : memref<1x512xf32, #tpu.memory_space<vmem>>, vector<1x512xf32>
    %5 = vector.broadcast %4 : vector<1x512xf32> to vector<8x512xf32>
    %6 = arith.addf %3, %5 : vector<8x512xf32>
    %cst_5 = arith.constant 0.000000e+00 : f32
    %7 = vector.broadcast %cst_5 : f32 to vector<8x512xf32>
    %8 = arith.maximumf %6, %7 : vector<8x512xf32>
    %9 = arith.truncf %8 : vector<8x512xf32> to vector<8x512xbf16>
    %c0_6 = arith.constant 0 : index
    %c0_7 = arith.constant 0 : index
    %10 = vector.load %arg4[%c0_6, %c0_7] : memref<512x512xbf16, #tpu.memory_space<vmem>>, vector<512x512xbf16>
    %cst_8 = arith.constant dense<0.000000e+00> : vector<8x512xf32>
    %11 = tpu.matmul %9, %10, %cst_8 {dimension_numbers = #tpu.dot_dimension_numbers<[1], [0], [0], [1], [0, 0, 1, 1], [], []>} : vector<8x512xbf16>, vector<512x512xbf16>, vector<8x512xf32> -> vector<8x512xf32>
    %c0_9 = arith.constant 0 : index
    %c0_10 = arith.constant 0 : index
    %12 = vector.load %arg5[%c0_9, %c0_10] : memref<1x512xf32, #tpu.memory_space<vmem>>, vector<1x512xf32>
    %13 = vector.broadcast %12 : vector<1x512xf32> to vector<8x512xf32>
    %14 = arith.addf %11, %13 : vector<8x512xf32>
    %cst_11 = arith.constant 0.000000e+00 : f32
    %15 = vector.broadcast %cst_11 : f32 to vector<8x512xf32>
    %16 = arith.maximumf %14, %15 : vector<8x512xf32>
    %17 = arith.truncf %16 : vector<8x512xf32> to vector<8x512xbf16>
    %c0_12 = arith.constant 0 : index
    %c0_13 = arith.constant 0 : index
    %18 = vector.load %arg6[%c0_12, %c0_13] : memref<512x128xbf16, #tpu.memory_space<vmem>>, vector<512x128xbf16>
    %cst_14 = arith.constant dense<0.000000e+00> : vector<8x128xf32>
    %19 = tpu.matmul %17, %18, %cst_14 {dimension_numbers = #tpu.dot_dimension_numbers<[1], [0], [0], [1], [0, 0, 1, 1], [], []>} : vector<8x512xbf16>, vector<512x128xbf16>, vector<8x128xf32> -> vector<8x128xf32>
    %c0_15 = arith.constant 0 : index
    %c0_16 = arith.constant 0 : index
    %20 = vector.load %arg7[%c0_15, %c0_16] : memref<8x128xf32, #tpu.memory_space<vmem>>, vector<8x128xf32>
    tpu.vector_store %arg7[%c0_15, %c0_16], %19 {strides = array<i32>} : memref<8x128xf32, #tpu.memory_space<vmem>>, vector<8x128xf32>,
    return
  }
  func.func @transform_0(%arg0: i32) -> (i32, i32) {
    %c0_i32 = arith.constant 0 : i32
    %c0_i32_0 = arith.constant 0 : i32
    return %arg0, %c0_i32 : i32, i32
  }
  func.func @transform_1(%arg0: i32) -> (i32, i32) {
    %c0_i32 = arith.constant 0 : i32
    %c0_i32_0 = arith.constant 0 : i32
    %c0_i32_1 = arith.constant 0 : i32
    return %c0_i32, %c0_i32_0 : i32, i32
  }
  func.func @transform_2(%arg0: i32) -> (i32, i32) {
    %c0_i32 = arith.constant 0 : i32
    %c0_i32_0 = arith.constant 0 : i32
    %c0_i32_1 = arith.constant 0 : i32
    return %c0_i32, %c0_i32_0 : i32, i32
  }
  func.func @transform_3(%arg0: i32) -> (i32, i32) {
    %c0_i32 = arith.constant 0 : i32
    %c0_i32_0 = arith.constant 0 : i32
    %c0_i32_1 = arith.constant 0 : i32
    return %c0_i32, %c0_i32_0 : i32, i32
  }
  func.func @transform_4(%arg0: i32) -> (i32, i32) {
    %c0_i32 = arith.constant 0 : i32
    %c0_i32_0 = arith.constant 0 : i32
    %c0_i32_1 = arith.constant 0 : i32
    return %c0_i32, %c0_i32_0 : i32, i32
  }
  func.func @transform_5(%arg0: i32) -> (i32, i32) {
    %c0_i32 = arith.constant 0 : i32
    %c0_i32_0 = arith.constant 0 : i32
    %c0_i32_1 = arith.constant 0 : i32
    return %c0_i32, %c0_i32_0 : i32, i32
  }
  func.func @transform_6(%arg0: i32) -> (i32, i32) {
    %c0_i32 = arith.constant 0 : i32
    %c0_i32_0 = arith.constant 0 : i32
    return %arg0, %c0_i32 : i32, i32
  }
}

</mosaic_0001>

<llo_original>
// kernel: afterstate_actor_critic_forward.1
$region0: #{afterstate_actor_critic_forward.1}
  #allocation0 [shape = 'u32[]', space=smem, size = 0x4, offset = 0x4, fixed_abs, tag = 'smem constant byte address 0x4 - core index']
  #allocation1 [shape = 'u32[144,128]{1,0:T(1,128)}', space=vmem, size = 0x12000, scoped, tag = 'internal scratch']
  %s0 = inlined_call_operand.vmem [shape: f32[16,512], index: 0, kind: input, shape index: {}]
  %s1 = inlined_call_operand.hbm [shape: bf16[512,512], index: 1, kind: input, shape index: {}]
  %s2 = inlined_call_operand.vmem [shape: f32[1,512], index: 2, kind: input, shape index: {}]
  %s3 = inlined_call_operand.hbm [shape: bf16[512,512], index: 3, kind: input, shape index: {}]
  %s4 = inlined_call_operand.vmem [shape: f32[1,512], index: 4, kind: input, shape index: {}]
  %s5 = inlined_call_operand.vmem [shape: bf16[512,128], index: 5, kind: input, shape index: {}]
  %s6 = inlined_call_operand.vmem [shape: f32[16,128], index: 6, kind: output, shape index: {}]
  %s7 = sld [smem:[#allocation0]]
  $region65: #{afterstate_actor_critic_forward.1} parent=0
    _
  %s9 = ssub.s32 1, %s7
  %s10 = scalar_select 0, %s9, %s7
  $region1: #{afterstate_actor_critic_forward.1} parent=0
    #allocation2 [shape = 'u8[524288]{0}', space=vmem, size = 0x80000, scoped, tag = 'input window, operand 1, single buffered']
    #allocation3 [shape = 's32[2]{0}', space=sflag, size = 0x8, scoped, tag = 'scoped memory for afterstate_actor_critic_forward.1']
    #allocation4 [shape = 'u8[524288]{0}', space=vmem, size = 0x80000, scoped, tag = 'input window, operand 3, single buffered']
    #allocation5 [shape = 's32[1]{0}', space=sflag, size = 0x4, scoped, tag = 'scoped memory for afterstate_actor_critic_forward.1']
    %11 = vsyncpa [#allocation3], 0
    %12 = vsyncpa [#allocation5], 0
    loop: start=0, step=1, limit=4
    $region2: #{afterstate_actor_critic_forward.1} parent=1 // loop_pre_header
      _
    $region3: #{afterstate_actor_critic_forward.1} parent=1 // loop_header
      %s14 = sphi 0, %s18
      %p15 = scmp.ge.s32.totalorder %s14, 4
      %s24 = sphi 0, %s26
      %s27 = sphi 0, %s24
      %s28 = sphi 0, %s27
      %s44 = sphi 0, %s28
      %s48 = sphi 0, %s48
      %s50 = sphi 0, %s48
      %s51 = sphi 0, %s50
      %s65 = sphi 0, %s51
      %s69 = sphi 0, %s69
      %s71 = sphi 0, %s69
      %s72 = sphi 0, %s71
      %s86 = sphi 0, %s72
      %s90 = sphi 0, %s90
      %s92 = sphi 0, %s90
      %s93 = sphi 0, %s92
      %s107 = sphi 0, %s93
      %s111 = sphi 0, %s111
      %s113 = sphi 0, %s111
      %s114 = sphi 0, %s113
      %s128 = sphi 0, %s114
      %s132 = sphi 0, %s132
      %s134 = sphi 0, %s132
      %s135 = sphi 0, %s134
      %s149 = sphi 0, %s135
      %s155 = sphi 0, %s157
      %s158 = sphi 0, %s155
      %s159 = sphi 0, %s158
      %s175 = sphi 0, %s159
    $region4: #{afterstate_actor_critic_forward.1} parent=1 // loop_header_branch
      %17 = sbr.rel (%p15) target = $region8
    $region5: #{afterstate_actor_critic_forward.1} parent=1 // loop_body
      %s19 = ssub.s32 %s14, 1
      %s20 = ssub.s32 %s14, 2
      %s21 = sadd.s32 %s14, 1
      %s22 = ssub.s32 %s14, %s21
      %p23 = scmp.eq.s32.totalorder %s22, 0
      %s25 = sadd.s32 %s24, 1
      %s26 = scalar_select %p23, %s24, %s25
      %p29 = pneg %p23
      %p30 = scmp.eq.s32.totalorder %s14, 1
      %p31 = por %p29, %p30
      %p32 = scmp.ne.s32.totalorder %s24, %s27
      %p33 = scmp.eq.s32.totalorder %s14, 0
      %p34 = por %p32, %p33
      %p35 = scmp.ne.s32.totalorder %s24, %s27
      %p36 = scmp.eq.s32.totalorder %s19, 1
      %p37 = por %p35, %p36
      %p38 = scmp.ne.s32.totalorder %s27, %s28
      %p39 = scmp.eq.s32.totalorder %s19, 0
      %p40 = por %p38, %p39
      %p41 = scmp.ne.s32.totalorder %s27, %s28
      %p42 = scmp.eq.s32.totalorder %s20, 1
      %p43 = por %p41, %p42
      %p45 = scmp.ne.s32.totalorder %s28, %s44
      %p46 = scmp.eq.s32.totalorder %s20, 0
      %p47 = por %p45, %p46
      %s49 = sadd.s32 %s48, 1
      %p52 = scmp.eq.s32.totalorder %s14, 1
      %p53 = scmp.ne.s32.totalorder %s48, %s50
      %p54 = scmp.eq.s32.totalorder %s14, 0
      %p55 = por %p53, %p54
      %p56 = scmp.ne.s32.totalorder %s48, %s50
      %p57 = scmp.eq.s32.totalorder %s19, 1
      %p58 = por %p56, %p57
      %p59 = scmp.ne.s32.totalorder %s50, %s51
      %p60 = scmp.eq.s32.totalorder %s19, 0
      %p61 = por %p59, %p60
      %p62 = scmp.ne.s32.totalorder %s50, %s51
      %p63 = scmp.eq.s32.totalorder %s20, 1
      %p64 = por %p62, %p63
      %p66 = scmp.ne.s32.totalorder %s51, %s65
      %p67 = scmp.eq.s32.totalorder %s20, 0
      %p68 = por %p66, %p67
      %s70 = sadd.s32 %s69, 1
      %p73 = scmp.eq.s32.totalorder %s14, 1
      %p74 = scmp.ne.s32.totalorder %s69, %s71
      %p75 = scmp.eq.s32.totalorder %s14, 0
      %p76 = por %p74, %p75
      %p77 = scmp.ne.s32.totalorder %s69, %s71
      %p78 = scmp.eq.s32.totalorder %s19, 1
      %p79 = por %p77, %p78
      %p80 = scmp.ne.s32.totalorder %s71, %s72
      %p81 = scmp.eq.s32.totalorder %s19, 0
      %p82 = por %p80, %p81
      %p83 = scmp.ne.s32.totalorder %s71, %s72
      %p84 = scmp.eq.s32.totalorder %s20, 1
      %p85 = por %p83, %p84
      %p87 = scmp.ne.s32.totalorder %s72, %s86
      %p88 = scmp.eq.s32.totalorder %s20, 0
      %p89 = por %p87, %p88
      %s91 = sadd.s32 %s90, 1
      %p94 = scmp.eq.s32.totalorder %s14, 1
      %p95 = scmp.ne.s32.totalorder %s90, %s92
      %p96 = scmp.eq.s32.totalorder %s14, 0
      %p97 = por %p95, %p96
      %p98 = scmp.ne.s32.totalorder %s90, %s92
      %p99 = scmp.eq.s32.totalorder %s19, 1
      %p100 = por %p98, %p99
      %p101 = scmp.ne.s32.totalorder %s92, %s93
      %p102 = scmp.eq.s32.totalorder %s19, 0
      %p103 = por %p101, %p102
      %p104 = scmp.ne.s32.totalorder %s92, %s93
      %p105 = scmp.eq.s32.totalorder %s20, 1
      %p106 = por %p104, %p105
      %p108 = scmp.ne.s32.totalorder %s93, %s107
      %p109 = scmp.eq.s32.totalorder %s20, 0
      %p110 = por %p108, %p109
      %s112 = sadd.s32 %s111, 1
      %p115 = scmp.eq.s32.totalorder %s14, 1
      %p116 = scmp.ne.s32.totalorder %s111, %s113
      %p117 = scmp.eq.s32.totalorder %s14, 0
      %p118 = por %p116, %p117
      %p119 = scmp.ne.s32.totalorder %s111, %s113
      %p120 = scmp.eq.s32.totalorder %s19, 1
      %p121 = por %p119, %p120
      %p122 = scmp.ne.s32.totalorder %s113, %s114
      %p123 = scmp.eq.s32.totalorder %s19, 0
      %p124 = por %p122, %p123
      %p125 = scmp.ne.s32.totalorder %s113, %s114
      %p126 = scmp.eq.s32.totalorder %s20, 1
      %p127 = por %p125, %p126
      %p129 = scmp.ne.s32.totalorder %s114, %s128
      %p130 = scmp.eq.s32.totalorder %s20, 0
      %p131 = por %p129, %p130
      %s133 = sadd.s32 %s132, 1
      %p136 = scmp.eq.s32.totalorder %s14, 1
      %p137 = scmp.ne.s32.totalorder %s132, %s134
      %p138 = scmp.eq.s32.totalorder %s14, 0
      %p139 = por %p137, %p138
      %p140 = scmp.ne.s32.totalorder %s132, %s134
      %p141 = scmp.eq.s32.totalorder %s19, 1
      %p142 = por %p140, %p141
      %p143 = scmp.ne.s32.totalorder %s134, %s135
      %p144 = scmp.eq.s32.totalorder %s19, 0
      %p145 = por %p143, %p144
      %p146 = scmp.ne.s32.totalorder %s134, %s135
      %p147 = scmp.eq.s32.totalorder %s20, 1
      %p148 = por %p146, %p147
      %p150 = scmp.ne.s32.totalorder %s135, %s149
      %p151 = scmp.eq.s32.totalorder %s20, 0
      %p152 = por %p150, %p151
      %s153 = ssub.s32 %s14, %s21
      %p154 = scmp.eq.s32.totalorder %s153, 0
      %s156 = sadd.s32 %s155, 1
      %s157 = scalar_select %p154, %s155, %s156
      %p160 = pneg %p154
      %p161 = scmp.eq.s32.totalorder %s14, 1
      %p162 = por %p160, %p161
      %p163 = scmp.ne.s32.totalorder %s155, %s158
      %p164 = scmp.eq.s32.totalorder %s14, 0
      %p165 = por %p163, %p164
      %p166 = scmp.ne.s32.totalorder %s155, %s158
      %p167 = scmp.eq.s32.totalorder %s19, 1
      %p168 = por %p166, %p167
      %p169 = scmp.ne.s32.totalorder %s158, %s159
      %p170 = scmp.eq.s32.totalorder %s19, 0
      %p171 = por %p169, %p170
      %p172 = scmp.ne.s32.totalorder %s158, %s159
      %p173 = scmp.eq.s32.totalorder %s20, 1
      %p174 = por %p172, %p173
      %p176 = scmp.ne.s32.totalorder %s159, %s175
      %p177 = scmp.eq.s32.totalorder %s20, 0
      %p178 = por %p176, %p177
      %p179 = scmp.le.s32.totalorder 1, %s14
      %p180 = scmp.lt.s32.totalorder %s14, 3
      %p181 = pnand %p179, %p180
      %p182 = pneg %p181
      // Predicated region
      $region9: #{afterstate_actor_critic_forward.1} parent=5 // pred_check
        _
      $region10: #{afterstate_actor_critic_forward.1} parent=5 // pred_check_branch
        %184 = sbr.rel (%p181) target = $region12
      $region11: #{afterstate_actor_critic_forward.1} parent=5 // pred_region
        %s185 = ssub.s32 %s14, 1
        // Predicated region
        $region13: #{afterstate_actor_critic_forward.1} parent=11 // pred_check
          %p186 = pneg %p61
        $region14: #{afterstate_actor_critic_forward.1} parent=11 // pred_check_branch
          %188 = sbr.rel (%p186) target = $region16
        $region15: #{afterstate_actor_critic_forward.1} parent=11 // pred_region
          %s190 = ssub.s32 16384, 16384
          %191 = vsyncadd [#allocation3], %s190
          %s192 = sshll.u32 [#allocation2], 4
          %s193 = int_to_ptr.vmem [resolvable:$true] %s192
          %198 = dma.hbm_to_vmem [thread:$0]  %s1, 16384, %s193, [#allocation3], 256, 256, 16
        $region16: #{afterstate_actor_critic_forward.1} parent=11 // pred_fallthru
          _
        // Predicated region
        $region17: #{afterstate_actor_critic_forward.1} parent=11 // pred_check
          %p199 = pneg %p82
        $region18: #{afterstate_actor_critic_forward.1} parent=11 // pred_check_branch
          %201 = sbr.rel (%p199) target = $region20
        $region19: #{afterstate_actor_critic_forward.1} parent=11 // pred_region
          _
        $region20: #{afterstate_actor_critic_forward.1} parent=11 // pred_fallthru
          _
        // Predicated region
        $region21: #{afterstate_actor_critic_forward.1} parent=11 // pred_check
          %p202 = pneg %p103
        $region22: #{afterstate_actor_critic_forward.1} parent=11 // pred_check_branch
          %204 = sbr.rel (%p202) target = $region24
        $region23: #{afterstate_actor_critic_forward.1} parent=11 // pred_region
          %s206 = ssub.s32 16384, 16384
          %207 = vsyncadd [#allocation5], %s206
          %s208 = sshll.u32 [#allocation4], 4
          %s209 = int_to_ptr.vmem [resolvable:$true] %s208
          %214 = dma.hbm_to_vmem [thread:$0]  %s3, 16384, %s209, [#allocation5], 256, 256, 16
        $region24: #{afterstate_actor_critic_forward.1} parent=11 // pred_fallthru
          _
        // Predicated region
        $region25: #{afterstate_actor_critic_forward.1} parent=11 // pred_check
          %p215 = pneg %p124
        $region26: #{afterstate_actor_critic_forward.1} parent=11 // pred_check_branch
          %217 = sbr.rel (%p215) target = $region28
        $region27: #{afterstate_actor_critic_forward.1} parent=11 // pred_region
          _
        $region28: #{afterstate_actor_critic_forward.1} parent=11 // pred_fallthru
          _
        // Predicated region
        $region29: #{afterstate_actor_critic_forward.1} parent=11 // pred_check
          %p218 = pneg %p145
        $region30: #{afterstate_actor_critic_forward.1} parent=11 // pred_check_branch
          %220 = sbr.rel (%p218) target = $region32
        $region31: #{afterstate_actor_critic_forward.1} parent=11 // pred_region
          _
        $region32: #{afterstate_actor_critic_forward.1} parent=11 // pred_fallthru
          _
      $region12: #{afterstate_actor_critic_forward.1} parent=5 // pred_fallthru
        _
      %p221 = scmp.lt.s32.totalorder %s14, 2
      // Predicated region
      $region33: #{afterstate_actor_critic_forward.1} parent=5 // pred_check
        %p222 = pneg %p221
      $region34: #{afterstate_actor_critic_forward.1} parent=5 // pred_check_branch
        %224 = sbr.rel (%p222) target = $region36
      $region35: #{afterstate_actor_critic_forward.1} parent=5 // pred_region
        // Predicated region
        $region37: #{afterstate_actor_critic_forward.1} parent=35 // pred_check
          %p225 = pneg %p34
        $region38: #{afterstate_actor_critic_forward.1} parent=35 // pred_check_branch
          %227 = sbr.rel (%p225) target = $region40
        $region39: #{afterstate_actor_critic_forward.1} parent=35 // pred_region
          %p228 = scmp.lt.s32.totalorder %s14, 1
          %s229 = scalar_select %p228, %s14, 1
          %s230 = smul.addr %s229, 4
          %s231 = smul.addr %s230, 8
          %s232 = scalar_lea.vmem %s0, %s231
        $region40: #{afterstate_actor_critic_forward.1} parent=35 // pred_fallthru
          _
      $region36: #{afterstate_actor_critic_forward.1} parent=5 // pred_fallthru
        _
      %p233 = scmp.le.s32.totalorder 1, %s14
      %p234 = scmp.lt.s32.totalorder %s14, 3
      %p235 = pnand %p233, %p234
      %p236 = pneg %p235
      // Predicated region
      $region41: #{afterstate_actor_critic_forward.1} parent=5 // pred_check
        _
      $region42: #{afterstate_actor_critic_forward.1} parent=5 // pred_check_branch
        %238 = sbr.rel (%p235) target = $region44
      $region43: #{afterstate_actor_critic_forward.1} parent=5 // pred_region
        %s239 = ssub.s32 %s14, 1
        // Predicated region
        $region45: #{afterstate_actor_critic_forward.1} parent=43 // pred_check
          %p240 = pneg %p61
        $region46: #{afterstate_actor_critic_forward.1} parent=43 // pred_check_branch
          %242 = sbr.rel (%p240) target = $region48
        $region47: #{afterstate_actor_critic_forward.1} parent=43 // pred_region
          %243 = dma.done [#allocation3], 16384
        $region48: #{afterstate_actor_critic_forward.1} parent=43 // pred_fallthru
          _
        // Predicated region
        $region49: #{afterstate_actor_critic_forward.1} parent=43 // pred_check
          %p244 = pneg %p103
        $region50: #{afterstate_actor_critic_forward.1} parent=43 // pred_check_branch
          %246 = sbr.rel (%p244) target = $region52
        $region51: #{afterstate_actor_critic_forward.1} parent=43 // pred_region
          %247 = dma.done [#allocation5], 16384
        $region52: #{afterstate_actor_critic_forward.1} parent=43 // pred_fallthru
          _
        %p248 = scmp.lt.s32.totalorder %s19, 1
        %s249 = scalar_select %p248, %s19, 1
        %s250 = smul.addr %s249, 4
        %s251 = smul.addr %s250, 8
        %s252 = scalar_lea.vmem %s0, %s251
        %p253 = pneg %p40
        %p254 = pneg %p37
        %p255 = pneg %p61
        %p256 = pneg %p58
        %p257 = pneg %p82
        %p258 = pneg %p79
        %p259 = pneg %p103
        %p260 = pneg %p100
        %p261 = pneg %p124
        %p262 = pneg %p121
        %p263 = pneg %p145
        %p264 = pneg %p142
        %p265 = pneg %p171
        %p266 = pneg %p168
        %p267 = scmp.lt.s32.totalorder %s19, 1
        %s268 = scalar_select %p267, %s19, 1
        %s269 = smul.addr %s268, 8
        %s270 = scalar_lea.vmem %s6, %s269
        %p271 = scmp.lt.s32.totalorder %s19, 1
        %s272 = scalar_select %p271, %s19, 1
        %s273 = smul.addr %s272, 4
        %s274 = smul.addr %s273, 8
        %s275 = scalar_lea.vmem %s0, %s274
        %p276 = scmp.lt.s32.totalorder %s19, 1
        %s277 = scalar_select %p276, %s19, 1
        %s278 = smul.addr %s277, 8
        %s279 = scalar_lea.vmem %s6, %s278
        %v281 = vld [vmem:[%s275] sm:$0xff]
        %v282 = vld [vmem:[%s275 + $0x8] sm:$0xff]
        %v283 = vld [vmem:[%s275 + $0x10] sm:$0xff]
        %v284 = vld [vmem:[%s275 + $0x18] sm:$0xff]
        %v285 = vpack.c.bf16 %v281, %v281
        %v286 = vpack.c.bf16 %v282, %v282
        %v287 = vpack.c.bf16 %v283, %v283
        %v288 = vpack.c.bf16 %v284, %v284
        %v289 = vld [vmem:[#allocation2] sm:$0xff]
        %v290 = vld [vmem:[#allocation2 + $0x8] sm:$0xff]
        %v291 = vld [vmem:[#allocation2 + $0x10] sm:$0xff]
        %v292 = vld [vmem:[#allocation2 + $0x18] sm:$0xff]
        %v293 = vld [vmem:[#allocation2 + $0x20] sm:$0xff]
        %v294 = vld [vmem:[#allocation2 + $0x28] sm:$0xff]
        %v295 = vld [vmem:[#allocation2 + $0x30] sm:$0xff]
        %v296 = vld [vmem:[#allocation2 + $0x38] sm:$0xff]
        %v297 = vld [vmem:[#allocation2 + $0x40] sm:$0xff]
        %v298 = vld [vmem:[#allocation2 + $0x48] sm:$0xff]
        %v299 = vld [vmem:[#allocation2 + $0x50] sm:$0xff]
        %v300 = vld [vmem:[#allocation2 + $0x58] sm:$0xff]
        %v301 = vld [vmem:[#allocation2 + $0x60] sm:$0xff]
        %v302 = vld [vmem:[#allocation2 + $0x68] sm:$0xff]
        %v303 = vld [vmem:[#allocation2 + $0x70] sm:$0xff]
        %v304 = vld [vmem:[#allocation2 + $0x78] sm:$0xff]
        %v305 = vld [vmem:[#allocation2 + $0x80] sm:$0xff]
        %v306 = vld [vmem:[#allocation2 + $0x88] sm:$0xff]
        %v307 = vld [vmem:[#allocation2 + $0x90] sm:$0xff]
        %v308 = vld [vmem:[#allocation2 + $0x98] sm:$0xff]
        %v309 = vld [vmem:[#allocation2 + $0xa0] sm:$0xff]
        %v310 = vld [vmem:[#allocation2 + $0xa8] sm:$0xff]
        %v311 = vld [vmem:[#allocation2 + $0xb0] sm:$0xff]
        %v312 = vld [vmem:[#allocation2 + $0xb8] sm:$0xff]
        %v313 = vld [vmem:[#allocation2 + $0xc0] sm:$0xff]
        %v314 = vld [vmem:[#allocation2 + $0xc8] sm:$0xff]
        %v315 = vld [vmem:[#allocation2 + $0xd0] sm:$0xff]
        %v316 = vld [vmem:[#allocation2 + $0xd8] sm:$0xff]
        %v317 = vld [vmem:[#allocation2 + $0xe0] sm:$0xff]
        %v318 = vld [vmem:[#allocation2 + $0xe8] sm:$0xff]
        %v319 = vld [vmem:[#allocation2 + $0xf0] sm:$0xff]
        %v320 = vld [vmem:[#allocation2 + $0xf8] sm:$0xff]
        %v321 = vld [vmem:[#allocation2 + $0x100] sm:$0xff]
        %v322 = vld [vmem:[#allocation2 + $0x108] sm:$0xff]
        %v323 = vld [vmem:[#allocation2 + $0x110] sm:$0xff]
        %v324 = vld [vmem:[#allocation2 + $0x118] sm:$0xff]
        %v325 = vld [vmem:[#allocation2 + $0x120] sm:$0xff]
        %v326 = vld [vmem:[#allocation2 + $0x128] sm:$0xff]
        %v327 = vld [vmem:[#allocation2 + $0x130] sm:$0xff]
        %v328 = vld [vmem:[#allocation2 + $0x138] sm:$0xff]
        %v329 = vld [vmem:[#allocation2 + $0x140] sm:$0xff]
        %v330 = vld [vmem:[#allocation2 + $0x148] sm:$0xff]
        %v331 = vld [vmem:[#allocation2 + $0x150] sm:$0xff]
        %v332 = vld [vmem:[#allocation2 + $0x158] sm:$0xff]
        %v333 = vld [vmem:[#allocation2 + $0x160] sm:$0xff]
        %v334 = vld [vmem:[#allocation2 + $0x168] sm:$0xff]
        %v335 = vld [vmem:[#allocation2 + $0x170] sm:$0xff]
        %v336 = vld [vmem:[#allocation2 + $0x178] sm:$0xff]
        %v337 = vld [vmem:[#allocation2 + $0x180] sm:$0xff]
        %v338 = vld [vmem:[#allocation2 + $0x188] sm:$0xff]
        %v339 = vld [vmem:[#allocation2 + $0x190] sm:$0xff]
        %v340 = vld [vmem:[#allocation2 + $0x198] sm:$0xff]
        %v341 = vld [vmem:[#allocation2 + $0x1a0] sm:$0xff]
        %v342 = vld [vmem:[#allocation2 + $0x1a8] sm:$0xff]
        %v343 = vld [vmem:[#allocation2 + $0x1b0] sm:$0xff]
        %v344 = vld [vmem:[#allocation2 + $0x1b8] sm:$0xff]
        %v345 = vld [vmem:[#allocation2 + $0x1c0] sm:$0xff]
        %v346 = vld [vmem:[#allocation2 + $0x1c8] sm:$0xff]
        %v347 = vld [vmem:[#allocation2 + $0x1d0] sm:$0xff]
        %v348 = vld [vmem:[#allocation2 + $0x1d8] sm:$0xff]
        %v349 = vld [vmem:[#allocation2 + $0x1e0] sm:$0xff]
        %v350 = vld [vmem:[#allocation2 + $0x1e8] sm:$0xff]
        %v351 = vld [vmem:[#allocation2 + $0x1f0] sm:$0xff]
        %v352 = vld [vmem:[#allocation2 + $0x1f8] sm:$0xff]
        %v353 = vld [vmem:[#allocation2 + $0x200] sm:$0xff]
        %v354 = vld [vmem:[#allocation2 + $0x208] sm:$0xff]
        %v355 = vld [vmem:[#allocation2 + $0x210] sm:$0xff]
        %v356 = vld [vmem:[#allocation2 + $0x218] sm:$0xff]
        %v357 = vld [vmem:[#allocation2 + $0x220] sm:$0xff]
        %v358 = vld [vmem:[#allocation2 + $0x228] sm:$0xff]
        %v359 = vld [vmem:[#allocation2 + $0x230] sm:$0xff]
        %v360 = vld [vmem:[#allocation2 + $0x238] sm:$0xff]
        %v361 = vld [vmem:[#allocation2 + $0x240] sm:$0xff]
        %v362 = vld [vmem:[#allocation2 + $0x248] sm:$0xff]
        %v363 = vld [vmem:[#allocation2 + $0x250] sm:$0xff]
        %v364 = vld [vmem:[#allocation2 + $0x258] sm:$0xff]
        %v365 = vld [vmem:[#allocation2 + $0x260] sm:$0xff]
        %v366 = vld [vmem:[#allocation2 + $0x268] sm:$0xff]
        %v367 = vld [vmem:[#allocation2 + $0x270] sm:$0xff]
        %v368 = vld [vmem:[#allocation2 + $0x278] sm:$0xff]
        %v369 = vld [vmem:[#allocation2 + $0x280] sm:$0xff]
        %v370 = vld [vmem:[#allocation2 + $0x288] sm:$0xff]
        %v371 = vld [vmem:[#allocation2 + $0x290] sm:$0xff]
        %v372 = vld [vmem:[#allocation2 + $0x298] sm:$0xff]
        %v373 = vld [vmem:[#allocation2 + $0x2a0] sm:$0xff]
        %v374 = vld [vmem:[#allocation2 + $0x2a8] sm:$0xff]
        %v375 = vld [vmem:[#allocation2 + $0x2b0] sm:$0xff]
        %v376 = vld [vmem:[#allocation2 + $0x2b8] sm:$0xff]
        %v377 = vld [vmem:[#allocation2 + $0x2c0] sm:$0xff]
        %v378 = vld [vmem:[#allocation2 + $0x2c8] sm:$0xff]
        %v379 = vld [vmem:[#allocation2 + $0x2d0] sm:$0xff]
        %v380 = vld [vmem:[#allocation2 + $0x2d8] sm:$0xff]
        %v381 = vld [vmem:[#allocation2 + $0x2e0] sm:$0xff]
        %v382 = vld [vmem:[#allocation2 + $0x2e8] sm:$0xff]
        %v383 = vld [vmem:[#allocation2 + $0x2f0] sm:$0xff]
        %v384 = vld [vmem:[#allocation2 + $0x2f8] sm:$0xff]
        %v385 = vld [vmem:[#allocation2 + $0x300] sm:$0xff]
        %v386 = vld [vmem:[#allocation2 + $0x308] sm:$0xff]
        %v387 = vld [vmem:[#allocation2 + $0x310] sm:$0xff]
        %v388 = vld [vmem:[#allocation2 + $0x318] sm:$0xff]
        %v389 = vld [vmem:[#allocation2 + $0x320] sm:$0xff]
        %v390 = vld [vmem:[#allocation2 + $0x328] sm:$0xff]
        %v391 = vld [vmem:[#allocation2 + $0x330] sm:$0xff]
        %v392 = vld [vmem:[#allocation2 + $0x338] sm:$0xff]
        %v393 = vld [vmem:[#allocation2 + $0x340] sm:$0xff]
        %v394 = vld [vmem:[#allocation2 + $0x348] sm:$0xff]
        %v395 = vld [vmem:[#allocation2 + $0x350] sm:$0xff]
        %v396 = vld [vmem:[#allocation2 + $0x358] sm:$0xff]
        %v397 = vld [vmem:[#allocation2 + $0x360] sm:$0xff]
        %v398 = vld [vmem:[#allocation2 + $0x368] sm:$0xff]
        %v399 = vld [vmem:[#allocation2 + $0x370] sm:$0xff]
        %v400 = vld [vmem:[#allocation2 + $0x378] sm:$0xff]
        %v401 = vld [vmem:[#allocation2 + $0x380] sm:$0xff]
        %v402 = vld [vmem:[#allocation2 + $0x388] sm:$0xff]
        %v403 = vld [vmem:[#allocation2 + $0x390] sm:$0xff]
        %v404 = vld [vmem:[#allocation2 + $0x398] sm:$0xff]
        %v405 = vld [vmem:[#allocation2 + $0x3a0] sm:$0xff]
        %v406 = vld [vmem:[#allocation2 + $0x3a8] sm:$0xff]
        %v407 = vld [vmem:[#allocation2 + $0x3b0] sm:$0xff]
        %v408 = vld [vmem:[#allocation2 + $0x3b8] sm:$0xff]
        %v409 = vld [vmem:[#allocation2 + $0x3c0] sm:$0xff]
        %v410 = vld [vmem:[#allocation2 + $0x3c8] sm:$0xff]
        %v411 = vld [vmem:[#allocation2 + $0x3d0] sm:$0xff]
        %v412 = vld [vmem:[#allocation2 + $0x3d8] sm:$0xff]
        %v413 = vld [vmem:[#allocation2 + $0x3e0] sm:$0xff]
        %v414 = vld [vmem:[#allocation2 + $0x3e8] sm:$0xff]
        %v415 = vld [vmem:[#allocation2 + $0x3f0] sm:$0xff]
        %v416 = vld [vmem:[#allocation2 + $0x3f8] sm:$0xff]
        %v417 = vld [vmem:[%s2] sm:$0xf]
        %v419 = vlaneseq
        %v420 = vshrl.u32 %v419, 7
        %v421 = vsub.s32 0, %v420
        %v422 = vrot.slane %v417, %v421
        %v423 = vlaneseq
        %v424 = vshrl.u32 %v423, 7
        %v425 = vsub.s32 1, %v424
        %v426 = vrot.slane %v417, %v425
        %v427 = vlaneseq
        %v428 = vshrl.u32 %v427, 7
        %v429 = vsub.s32 2, %v428
        %v430 = vrot.slane %v417, %v429
        %v431 = vlaneseq
        %v432 = vshrl.u32 %v431, 7
        %v433 = vsub.s32 3, %v432
        %v434 = vrot.slane %v417, %v433
        %v567 = vunpack.c.l.b16 %v289
        %v568 = vunpack.c.h.b16 %v289
        %v569 = vunpack.c.l.b16 %v290
        %v570 = vunpack.c.h.b16 %v290
        %v571 = vunpack.c.l.b16 %v291
        %v572 = vunpack.c.h.b16 %v291
        %v573 = vunpack.c.l.b16 %v292
        %v574 = vunpack.c.h.b16 %v292
        %v575 = vunpack.c.l.b16 %v293
        %v576 = vunpack.c.h.b16 %v293
        %v577 = vunpack.c.l.b16 %v294
        %v578 = vunpack.c.h.b16 %v294
        %v579 = vunpack.c.l.b16 %v295
        %v580 = vunpack.c.h.b16 %v295
        %v581 = vunpack.c.l.b16 %v296
        %v582 = vunpack.c.h.b16 %v296
        %v583 = vunpack.c.l.b16 %v297
        %v584 = vunpack.c.h.b16 %v297
        %v585 = vunpack.c.l.b16 %v298
        %v586 = vunpack.c.h.b16 %v298
        %v587 = vunpack.c.l.b16 %v299
        %v588 = vunpack.c.h.b16 %v299
        %v589 = vunpack.c.l.b16 %v300
        %v590 = vunpack.c.h.b16 %v300
        %v591 = vunpack.c.l.b16 %v301
        %v592 = vunpack.c.h.b16 %v301
        %v593 = vunpack.c.l.b16 %v302
        %v594 = vunpack.c.h.b16 %v302
        %v595 = vunpack.c.l.b16 %v303
        %v596 = vunpack.c.h.b16 %v303
        %v597 = vunpack.c.l.b16 %v304
        %v598 = vunpack.c.h.b16 %v304
        %v599 = vunpack.c.l.b16 %v305
        %v600 = vunpack.c.h.b16 %v305
        %v601 = vunpack.c.l.b16 %v306
        %v602 = vunpack.c.h.b16 %v306
        %v603 = vunpack.c.l.b16 %v307
        %v604 = vunpack.c.h.b16 %v307
        %v605 = vunpack.c.l.b16 %v308
        %v606 = vunpack.c.h.b16 %v308
        %v607 = vunpack.c.l.b16 %v309
        %v608 = vunpack.c.h.b16 %v309
        %v609 = vunpack.c.l.b16 %v310
        %v610 = vunpack.c.h.b16 %v310
        %v611 = vunpack.c.l.b16 %v311
        %v612 = vunpack.c.h.b16 %v311
        %v613 = vunpack.c.l.b16 %v312
        %v614 = vunpack.c.h.b16 %v312
        %v615 = vunpack.c.l.b16 %v313
        %v616 = vunpack.c.h.b16 %v313
        %v617 = vunpack.c.l.b16 %v314
        %v618 = vunpack.c.h.b16 %v314
        %v619 = vunpack.c.l.b16 %v315
        %v620 = vunpack.c.h.b16 %v315
        %v621 = vunpack.c.l.b16 %v316
        %v622 = vunpack.c.h.b16 %v316
        %v623 = vunpack.c.l.b16 %v317
        %v624 = vunpack.c.h.b16 %v317
        %v625 = vunpack.c.l.b16 %v318
        %v626 = vunpack.c.h.b16 %v318
        %v627 = vunpack.c.l.b16 %v319
        %v628 = vunpack.c.h.b16 %v319
        %v629 = vunpack.c.l.b16 %v320
        %v630 = vunpack.c.h.b16 %v320
        %v631 = vunpack.c.l.b16 %v321
        %v632 = vunpack.c.h.b16 %v321
        %v633 = vunpack.c.l.b16 %v322
        %v634 = vunpack.c.h.b16 %v322
        %v635 = vunpack.c.l.b16 %v323
        %v636 = vunpack.c.h.b16 %v323
        %v637 = vunpack.c.l.b16 %v324
        %v638 = vunpack.c.h.b16 %v324
        %v639 = vunpack.c.l.b16 %v325
        %v640 = vunpack.c.h.b16 %v325
        %v641 = vunpack.c.l.b16 %v326
        %v642 = vunpack.c.h.b16 %v326
        %v643 = vunpack.c.l.b16 %v327
        %v644 = vunpack.c.h.b16 %v327
        %v645 = vunpack.c.l.b16 %v328
        %v646 = vunpack.c.h.b16 %v328
        %v647 = vunpack.c.l.b16 %v329
        %v648 = vunpack.c.h.b16 %v329
        %v649 = vunpack.c.l.b16 %v330
        %v650 = vunpack.c.h.b16 %v330
        %v651 = vunpack.c.l.b16 %v331
        %v652 = vunpack.c.h.b16 %v331
        %v653 = vunpack.c.l.b16 %v332
        %v654 = vunpack.c.h.b16 %v332
        %v655 = vunpack.c.l.b16 %v333
        %v656 = vunpack.c.h.b16 %v333
        %v657 = vunpack.c.l.b16 %v334
        %v658 = vunpack.c.h.b16 %v334
        %v659 = vunpack.c.l.b16 %v335
        %v660 = vunpack.c.h.b16 %v335
        %v661 = vunpack.c.l.b16 %v336
        %v662 = vunpack.c.h.b16 %v336
        %v663 = vunpack.c.l.b16 %v337
        %v664 = vunpack.c.h.b16 %v337
        %v665 = vunpack.c.l.b16 %v338
        %v666 = vunpack.c.h.b16 %v338
        %v667 = vunpack.c.l.b16 %v339
        %v668 = vunpack.c.h.b16 %v339
        %v669 = vunpack.c.l.b16 %v340
        %v670 = vunpack.c.h.b16 %v340
        %v671 = vunpack.c.l.b16 %v341
        %v672 = vunpack.c.h.b16 %v341
        %v673 = vunpack.c.l.b16 %v342
        %v674 = vunpack.c.h.b16 %v342
        %v675 = vunpack.c.l.b16 %v343
        %v676 = vunpack.c.h.b16 %v343
        %v677 = vunpack.c.l.b16 %v344
        %v678 = vunpack.c.h.b16 %v344
        %v679 = vunpack.c.l.b16 %v345
        %v680 = vunpack.c.h.b16 %v345
        %v681 = vunpack.c.l.b16 %v346
        %v682 = vunpack.c.h.b16 %v346
        %v683 = vunpack.c.l.b16 %v347
        %v684 = vunpack.c.h.b16 %v347
        %v685 = vunpack.c.l.b16 %v348
        %v686 = vunpack.c.h.b16 %v348
        %v687 = vunpack.c.l.b16 %v349
        %v688 = vunpack.c.h.b16 %v349
        %v689 = vunpack.c.l.b16 %v350
        %v690 = vunpack.c.h.b16 %v350
        %v691 = vunpack.c.l.b16 %v351
        %v692 = vunpack.c.h.b16 %v351
        %v693 = vunpack.c.l.b16 %v352
        %v694 = vunpack.c.h.b16 %v352
        %v695 = vunpack.c.l.b16 %v353
        %v696 = vunpack.c.h.b16 %v353
        %v697 = vunpack.c.l.b16 %v354
        %v698 = vunpack.c.h.b16 %v354
        %v699 = vunpack.c.l.b16 %v355
        %v700 = vunpack.c.h.b16 %v355
        %v701 = vunpack.c.l.b16 %v356
        %v702 = vunpack.c.h.b16 %v356
        %v703 = vunpack.c.l.b16 %v357
        %v704 = vunpack.c.h.b16 %v357
        %v705 = vunpack.c.l.b16 %v358
        %v706 = vunpack.c.h.b16 %v358
        %v707 = vunpack.c.l.b16 %v359
        %v708 = vunpack.c.h.b16 %v359
        %v709 = vunpack.c.l.b16 %v360
        %v710 = vunpack.c.h.b16 %v360
        %v711 = vunpack.c.l.b16 %v361
        %v712 = vunpack.c.h.b16 %v361
        %v713 = vunpack.c.l.b16 %v362
        %v714 = vunpack.c.h.b16 %v362
        %v715 = vunpack.c.l.b16 %v363
        %v716 = vunpack.c.h.b16 %v363
        %v717 = vunpack.c.l.b16 %v364
        %v718 = vunpack.c.h.b16 %v364
        %v719 = vunpack.c.l.b16 %v365
        %v720 = vunpack.c.h.b16 %v365
        %v721 = vunpack.c.l.b16 %v366
        %v722 = vunpack.c.h.b16 %v366
        %v723 = vunpack.c.l.b16 %v367
        %v724 = vunpack.c.h.b16 %v367
        %v725 = vunpack.c.l.b16 %v368
        %v726 = vunpack.c.h.b16 %v368
        %v727 = vunpack.c.l.b16 %v369
        %v728 = vunpack.c.h.b16 %v369
        %v729 = vunpack.c.l.b16 %v370
        %v730 = vunpack.c.h.b16 %v370
        %v731 = vunpack.c.l.b16 %v371
        %v732 = vunpack.c.h.b16 %v371
        %v733 = vunpack.c.l.b16 %v372
        %v734 = vunpack.c.h.b16 %v372
        %v735 = vunpack.c.l.b16 %v373
        %v736 = vunpack.c.h.b16 %v373
        %v737 = vunpack.c.l.b16 %v374
        %v738 = vunpack.c.h.b16 %v374
        %v739 = vunpack.c.l.b16 %v375
        %v740 = vunpack.c.h.b16 %v375
        %v741 = vunpack.c.l.b16 %v376
        %v742 = vunpack.c.h.b16 %v376
        %v743 = vunpack.c.l.b16 %v377
        %v744 = vunpack.c.h.b16 %v377
        %v745 = vunpack.c.l.b16 %v378
        %v746 = vunpack.c.h.b16 %v378
        %v747 = vunpack.c.l.b16 %v379
        %v748 = vunpack.c.h.b16 %v379
        %v749 = vunpack.c.l.b16 %v380
        %v750 = vunpack.c.h.b16 %v380
        %v751 = vunpack.c.l.b16 %v381
        %v752 = vunpack.c.h.b16 %v381
        %v753 = vunpack.c.l.b16 %v382
        %v754 = vunpack.c.h.b16 %v382
        %v755 = vunpack.c.l.b16 %v383
        %v756 = vunpack.c.h.b16 %v383
        %v757 = vunpack.c.l.b16 %v384
        %v758 = vunpack.c.h.b16 %v384
        %v759 = vunpack.c.l.b16 %v385
        %v760 = vunpack.c.h.b16 %v385
        %v761 = vunpack.c.l.b16 %v386
        %v762 = vunpack.c.h.b16 %v386
        %v763 = vunpack.c.l.b16 %v387
        %v764 = vunpack.c.h.b16 %v387
        %v765 = vunpack.c.l.b16 %v388
        %v766 = vunpack.c.h.b16 %v388
        %v767 = vunpack.c.l.b16 %v389
        %v768 = vunpack.c.h.b16 %v389
        %v769 = vunpack.c.l.b16 %v390
        %v770 = vunpack.c.h.b16 %v390
        %v771 = vunpack.c.l.b16 %v391
        %v772 = vunpack.c.h.b16 %v391
        %v773 = vunpack.c.l.b16 %v392
        %v774 = vunpack.c.h.b16 %v392
        %v775 = vunpack.c.l.b16 %v393
        %v776 = vunpack.c.h.b16 %v393
        %v777 = vunpack.c.l.b16 %v394
        %v778 = vunpack.c.h.b16 %v394
        %v779 = vunpack.c.l.b16 %v395
        %v780 = vunpack.c.h.b16 %v395
        %v781 = vunpack.c.l.b16 %v396
        %v782 = vunpack.c.h.b16 %v396
        %v783 = vunpack.c.l.b16 %v397
        %v784 = vunpack.c.h.b16 %v397
        %v785 = vunpack.c.l.b16 %v398
        %v786 = vunpack.c.h.b16 %v398
        %v787 = vunpack.c.l.b16 %v399
        %v788 = vunpack.c.h.b16 %v399
        %v789 = vunpack.c.l.b16 %v400
        %v790 = vunpack.c.h.b16 %v400
        %v791 = vunpack.c.l.b16 %v401
        %v792 = vunpack.c.h.b16 %v401
        %v793 = vunpack.c.l.b16 %v402
        %v794 = vunpack.c.h.b16 %v402
        %v795 = vunpack.c.l.b16 %v403
        %v796 = vunpack.c.h.b16 %v403
        %v797 = vunpack.c.l.b16 %v404
        %v798 = vunpack.c.h.b16 %v404
        %v799 = vunpack.c.l.b16 %v405
        %v800 = vunpack.c.h.b16 %v405
        %v801 = vunpack.c.l.b16 %v406
        %v802 = vunpack.c.h.b16 %v406
        %v803 = vunpack.c.l.b16 %v407
        %v804 = vunpack.c.h.b16 %v407
        %v805 = vunpack.c.l.b16 %v408
        %v806 = vunpack.c.h.b16 %v408
        %v807 = vunpack.c.l.b16 %v409
        %v808 = vunpack.c.h.b16 %v409
        %v809 = vunpack.c.l.b16 %v410
        %v810 = vunpack.c.h.b16 %v410
        %v811 = vunpack.c.l.b16 %v411
        %v812 = vunpack.c.h.b16 %v411
        %v813 = vunpack.c.l.b16 %v412
        %v814 = vunpack.c.h.b16 %v412
        %v815 = vunpack.c.l.b16 %v413
        %v816 = vunpack.c.h.b16 %v413
        %v817 = vunpack.c.l.b16 %v414
        %v818 = vunpack.c.h.b16 %v414
        %v819 = vunpack.c.l.b16 %v415
        %v820 = vunpack.c.h.b16 %v415
        %v821 = vunpack.c.l.b16 %v416
        %v822 = vunpack.c.h.b16 %v416
        %v823 = vpack.c.b16 %v571, %v567
        %v824 = vpack.c.b16 %v572, %v568
        %v825 = vpack.c.b16 %v573, %v569
        %v826 = vpack.c.b16 %v574, %v570
        %v827 = vpack.c.b16 %v579, %v575
        %v828 = vpack.c.b16 %v580, %v576
        %v829 = vpack.c.b16 %v581, %v577
        %v830 = vpack.c.b16 %v582, %v578
        %v831 = vpack.c.b16 %v587, %v583
        %v832 = vpack.c.b16 %v588, %v584
        %v833 = vpack.c.b16 %v589, %v585
        %v834 = vpack.c.b16 %v590, %v586
        %v835 = vpack.c.b16 %v595, %v591
        %v836 = vpack.c.b16 %v596, %v592
        %v837 = vpack.c.b16 %v597, %v593
        %v838 = vpack.c.b16 %v598, %v594
        %v839 = vpack.c.b16 %v603, %v599
        %v840 = vpack.c.b16 %v604, %v600
        %v841 = vpack.c.b16 %v605, %v601
        %v842 = vpack.c.b16 %v606, %v602
        %v843 = vpack.c.b16 %v611, %v607
        %v844 = vpack.c.b16 %v612, %v608
        %v845 = vpack.c.b16 %v613, %v609
        %v846 = vpack.c.b16 %v614, %v610
        %v847 = vpack.c.b16 %v619, %v615
        %v848 = vpack.c.b16 %v620, %v616
        %v849 = vpack.c.b16 %v621, %v617
        %v850 = vpack.c.b16 %v622, %v618
        %v851 = vpack.c.b16 %v627, %v623
        %v852 = vpack.c.b16 %v628, %v624
        %v853 = vpack.c.b16 %v629, %v625
        %v854 = vpack.c.b16 %v630, %v626
        %v855 = vpack.c.b16 %v635, %v631
        %v856 = vpack.c.b16 %v636, %v632
        %v857 = vpack.c.b16 %v637, %v633
        %v858 = vpack.c.b16 %v638, %v634
        %v859 = vpack.c.b16 %v643, %v639
        %v860 = vpack.c.b16 %v644, %v640
        %v861 = vpack.c.b16 %v645, %v641
        %v862 = vpack.c.b16 %v646, %v642
        %v863 = vpack.c.b16 %v651, %v647
        %v864 = vpack.c.b16 %v652, %v648
        %v865 = vpack.c.b16 %v653, %v649
        %v866 = vpack.c.b16 %v654, %v650
        %v867 = vpack.c.b16 %v659, %v655
        %v868 = vpack.c.b16 %v660, %v656
        %v869 = vpack.c.b16 %v661, %v657
        %v870 = vpack.c.b16 %v662, %v658
        %v871 = vpack.c.b16 %v667, %v663
        %v872 = vpack.c.b16 %v668, %v664
        %v873 = vpack.c.b16 %v669, %v665
        %v874 = vpack.c.b16 %v670, %v666
        %v875 = vpack.c.b16 %v675, %v671
        %v876 = vpack.c.b16 %v676, %v672
        %v877 = vpack.c.b16 %v677, %v673
        %v878 = vpack.c.b16 %v678, %v674
        %v879 = vpack.c.b16 %v683, %v679
        %v880 = vpack.c.b16 %v684, %v680
        %v881 = vpack.c.b16 %v685, %v681
        %v882 = vpack.c.b16 %v686, %v682
        %v883 = vpack.c.b16 %v691, %v687
        %v884 = vpack.c.b16 %v692, %v688
        %v885 = vpack.c.b16 %v693, %v689
        %v886 = vpack.c.b16 %v694, %v690
        %v887 = vpack.c.b16 %v699, %v695
        %v888 = vpack.c.b16 %v700, %v696
        %v889 = vpack.c.b16 %v701, %v697
        %v890 = vpack.c.b16 %v702, %v698
        %v891 = vpack.c.b16 %v707, %v703
        %v892 = vpack.c.b16 %v708, %v704
        %v893 = vpack.c.b16 %v709, %v705
        %v894 = vpack.c.b16 %v710, %v706
        %v895 = vpack.c.b16 %v715, %v711
        %v896 = vpack.c.b16 %v716, %v712
        %v897 = vpack.c.b16 %v717, %v713
        %v898 = vpack.c.b16 %v718, %v714
        %v899 = vpack.c.b16 %v723, %v719
        %v900 = vpack.c.b16 %v724, %v720
        %v901 = vpack.c.b16 %v725, %v721
        %v902 = vpack.c.b16 %v726, %v722
        %v903 = vpack.c.b16 %v731, %v727
        %v904 = vpack.c.b16 %v732, %v728
        %v905 = vpack.c.b16 %v733, %v729
        %v906 = vpack.c.b16 %v734, %v730
        %v907 = vpack.c.b16 %v739, %v735
        %v908 = vpack.c.b16 %v740, %v736
        %v909 = vpack.c.b16 %v741, %v737
        %v910 = vpack.c.b16 %v742, %v738
        %v911 = vpack.c.b16 %v747, %v743
        %v912 = vpack.c.b16 %v748, %v744
        %v913 = vpack.c.b16 %v749, %v745
        %v914 = vpack.c.b16 %v750, %v746
        %v915 = vpack.c.b16 %v755, %v751
        %v916 = vpack.c.b16 %v756, %v752
        %v917 = vpack.c.b16 %v757, %v753
        %v918 = vpack.c.b16 %v758, %v754
        %v919 = vpack.c.b16 %v763, %v759
        %v920 = vpack.c.b16 %v764, %v760
        %v921 = vpack.c.b16 %v765, %v761
        %v922 = vpack.c.b16 %v766, %v762
        %v923 = vpack.c.b16 %v771, %v767
        %v924 = vpack.c.b16 %v772, %v768
        %v925 = vpack.c.b16 %v773, %v769
        %v926 = vpack.c.b16 %v774, %v770
        %v927 = vpack.c.b16 %v779, %v775
        %v928 = vpack.c.b16 %v780, %v776
        %v929 = vpack.c.b16 %v781, %v777
        %v930 = vpack.c.b16 %v782, %v778
        %v931 = vpack.c.b16 %v787, %v783
        %v932 = vpack.c.b16 %v788, %v784
        %v933 = vpack.c.b16 %v789, %v785
        %v934 = vpack.c.b16 %v790, %v786
        %v935 = vpack.c.b16 %v795, %v791
        %v936 = vpack.c.b16 %v796, %v792
        %v937 = vpack.c.b16 %v797, %v793
        %v938 = vpack.c.b16 %v798, %v794
        %v939 = vpack.c.b16 %v803, %v799
        %v940 = vpack.c.b16 %v804, %v800
        %v941 = vpack.c.b16 %v805, %v801
        %v942 = vpack.c.b16 %v806, %v802
        %v943 = vpack.c.b16 %v811, %v807
        %v944 = vpack.c.b16 %v812, %v808
        %v945 = vpack.c.b16 %v813, %v809
        %v946 = vpack.c.b16 %v814, %v810
        %v947 = vpack.c.b16 %v819, %v815
        %v948 = vpack.c.b16 %v820, %v816
        %v949 = vpack.c.b16 %v821, %v817
        %v950 = vpack.c.b16 %v822, %v818
        %1079 = vmatprep.subr.bf16.mxu0 %v852
        %1080 = vmatpush1.bf16.msra.mxu0 %v851
        %1081 = vmatprep.subr.bf16.mxu0 %v848
        %1082 = vmatpush1.bf16.msra.mxu0 %v847
        %1083 = vmatprep.subr.bf16.mxu0 %v844
        %1084 = vmatpush1.bf16.msra.mxu0 %v843
        %1085 = vmatprep.subr.bf16.mxu0 %v840
        %1086 = vmatpush1.bf16.msra.mxu0 %v839
        %1087 = vmatprep.subr.bf16.mxu0 %v836
        %1088 = vmatpush1.bf16.msra.mxu0 %v835
        %1089 = vmatprep.subr.bf16.mxu0 %v832
        %1090 = vmatpush1.bf16.msra.mxu0 %v831
        %1091 = vmatprep.subr.bf16.mxu0 %v828
        %1092 = vmatpush1.bf16.msra.mxu0 %v827
        %1093 = vmatprep.subr.bf16.mxu0 %v824
        %1094 = vmatpush1.bf16.msra.mxu0 %v823
        %1095 = vmatprep.subr.bf16.mxu0 %v884
        %1096 = vmatpush2.bf16.msra.mxu0 %v883
        %1097 = vmatprep.subr.bf16.mxu0 %v880
        %1098 = vmatpush2.bf16.msra.mxu0 %v879
        %1099 = vmatprep.subr.bf16.mxu0 %v876
        %1100 = vmatpush2.bf16.msra.mxu0 %v875
        %1101 = vmatprep.subr.bf16.mxu0 %v872
        %1102 = vmatpush2.bf16.msra.mxu0 %v871
        %1103 = vmatprep.subr.bf16.mxu0 %v868
        %1104 = vmatpush2.bf16.msra.mxu0 %v867
        %1105 = vmatprep.subr.bf16.mxu0 %v864
        %1106 = vmatpush2.bf16.msra.mxu0 %v863
        %1107 = vmatprep.subr.bf16.mxu0 %v860
        %1108 = vmatpush2.bf16.msra.mxu0 %v859
        %1109 = vmatprep.subr.bf16.mxu0 %v856
        %1110 = vmatpush2.bf16.msra.mxu0 %v855
        %1111 = vmatprep.mubr.bf16.mxu0 %v286
        %1112 = vmatmul.mubr.bf16.gmra.mxu0 %v285
        %v1113 = vpop.f32.mrf.mxu0
        %v1114 = vadd.f32 %v422, %v1113
        %v1115 = vpop.f32.mrf.mxu0
        %v1116 = vadd.f32 %v426, %v1115
        %v1117 = vpop.f32.mrf.mxu0
        %v1118 = vpop.f32.mrf.mxu0
        %1119 = vdwg.mxu0
        %1120 = vmatprep.subr.bf16.mxu0 %v916
        %1121 = vmatpush1.bf16.msra.mxu0 %v915
        %1122 = vmatprep.subr.bf16.mxu0 %v912
        %1123 = vmatpush1.bf16.msra.mxu0 %v911
        %1124 = vmatprep.subr.bf16.mxu0 %v908
        %1125 = vmatpush1.bf16.msra.mxu0 %v907
        %1126 = vmatprep.subr.bf16.mxu0 %v904
        %1127 = vmatpush1.bf16.msra.mxu0 %v903
        %1128 = vmatprep.subr.bf16.mxu0 %v900
        %1129 = vmatpush1.bf16.msra.mxu0 %v899
        %1130 = vmatprep.subr.bf16.mxu0 %v896
        %1131 = vmatpush1.bf16.msra.mxu0 %v895
        %1132 = vmatprep.subr.bf16.mxu0 %v892
        %1133 = vmatpush1.bf16.msra.mxu0 %v891
        %1134 = vmatprep.subr.bf16.mxu0 %v888
        %1135 = vmatpush1.bf16.msra.mxu0 %v887
        %1136 = vmatprep.subr.bf16.mxu0 %v948
        %1137 = vmatpush2.bf16.msra.mxu0 %v947
        %1138 = vmatprep.subr.bf16.mxu0 %v944
        %1139 = vmatpush2.bf16.msra.mxu0 %v943
        %1140 = vmatprep.subr.bf16.mxu0 %v940
        %1141 = vmatpush2.bf16.msra.mxu0 %v939
        %1142 = vmatprep.subr.bf16.mxu0 %v936
        %1143 = vmatpush2.bf16.msra.mxu0 %v935
        %1144 = vmatprep.subr.bf16.mxu0 %v932
        %1145 = vmatpush2.bf16.msra.mxu0 %v931
        %1146 = vmatprep.subr.bf16.mxu0 %v928
        %1147 = vmatpush2.bf16.msra.mxu0 %v927
        %1148 = vmatprep.subr.bf16.mxu0 %v924
        %1149 = vmatpush2.bf16.msra.mxu0 %v923
        %1150 = vmatprep.subr.bf16.mxu0 %v920
        %1151 = vmatpush2.bf16.msra.mxu0 %v919
        %1152 = vmatprep.mubr.bf16.mxu0 %v288
        %1153 = vmatmul.mubr.bf16.gmra.mxu0 %v287
        %v1154 = vpop.f32.mrf.mxu0
        %v1155 = vadd.f32 %v1114, %v1154
        %v1156 = vpop.f32.mrf.mxu0
        %v1157 = vadd.f32 %v1116, %v1156
        %v1158 = vpop.f32.mrf.mxu0
        %v1159 = vpop.f32.mrf.mxu0
        %1160 = vdwg.mxu0
        %1161 = vmatprep.subr.bf16.mxu0 %v854
        %1162 = vmatpush1.bf16.msra.mxu0 %v853
        %1163 = vmatprep.subr.bf16.mxu0 %v850
        %1164 = vmatpush1.bf16.msra.mxu0 %v849
        %1165 = vmatprep.subr.bf16.mxu0 %v846
        %1166 = vmatpush1.bf16.msra.mxu0 %v845
        %1167 = vmatprep.subr.bf16.mxu0 %v842
        %1168 = vmatpush1.bf16.msra.mxu0 %v841
        %1169 = vmatprep.subr.bf16.mxu0 %v838
        %1170 = vmatpush1.bf16.msra.mxu0 %v837
        %1171 = vmatprep.subr.bf16.mxu0 %v834
        %1172 = vmatpush1.bf16.msra.mxu0 %v833
        %1173 = vmatprep.subr.bf16.mxu0 %v830
        %1174 = vmatpush1.bf16.msra.mxu0 %v829
        %1175 = vmatprep.subr.bf16.mxu0 %v826
        %1176 = vmatpush1.bf16.msra.mxu0 %v825
        %1177 = vmatprep.subr.bf16.mxu0 %v886
        %1178 = vmatpush2.bf16.msra.mxu0 %v885
        %1179 = vmatprep.subr.bf16.mxu0 %v882
        %1180 = vmatpush2.bf16.msra.mxu0 %v881
        %1181 = vmatprep.subr.bf16.mxu0 %v878
        %1182 = vmatpush2.bf16.msra.mxu0 %v877
        %1183 = vmatprep.subr.bf16.mxu0 %v874
        %1184 = vmatpush2.bf16.msra.mxu0 %v873
        %1185 = vmatprep.subr.bf16.mxu0 %v870
        %1186 = vmatpush2.bf16.msra.mxu0 %v869
        %1187 = vmatprep.subr.bf16.mxu0 %v866
        %1188 = vmatpush2.bf16.msra.mxu0 %v865
        %1189 = vmatprep.subr.bf16.mxu0 %v862
        %1190 = vmatpush2.bf16.msra.mxu0 %v861
        %1191 = vmatprep.subr.bf16.mxu0 %v858
        %1192 = vmatpush2.bf16.msra.mxu0 %v857
        %1193 = vmatprep.mubr.bf16.mxu0 %v286
        %1194 = vmatmul.mubr.bf16.gmra.mxu0 %v285
        %v1195 = vpop.f32.mrf.mxu0
        %v1196 = vadd.f32 %v430, %v1195
        %v1197 = vpop.f32.mrf.mxu0
        %v1198 = vadd.f32 %v434, %v1197
        %v1199 = vpop.f32.mrf.mxu0
        %v1200 = vpop.f32.mrf.mxu0
        %1201 = vdwg.mxu0
        %1202 = vmatprep.subr.bf16.mxu0 %v918
        %1203 = vmatpush1.bf16.msra.mxu0 %v917
        %1204 = vmatprep.subr.bf16.mxu0 %v914
        %1205 = vmatpush1.bf16.msra.mxu0 %v913
        %1206 = vmatprep.subr.bf16.mxu0 %v910
        %1207 = vmatpush1.bf16.msra.mxu0 %v909
        %1208 = vmatprep.subr.bf16.mxu0 %v906
        %1209 = vmatpush1.bf16.msra.mxu0 %v905
        %1210 = vmatprep.subr.bf16.mxu0 %v902
        %1211 = vmatpush1.bf16.msra.mxu0 %v901
        %1212 = vmatprep.subr.bf16.mxu0 %v898
        %1213 = vmatpush1.bf16.msra.mxu0 %v897
        %1214 = vmatprep.subr.bf16.mxu0 %v894
        %1215 = vmatpush1.bf16.msra.mxu0 %v893
        %1216 = vmatprep.subr.bf16.mxu0 %v890
        %1217 = vmatpush1.bf16.msra.mxu0 %v889
        %1218 = vmatprep.subr.bf16.mxu0 %v950
        %1219 = vmatpush2.bf16.msra.mxu0 %v949
        %1220 = vmatprep.subr.bf16.mxu0 %v946
        %1221 = vmatpush2.bf16.msra.mxu0 %v945
        %1222 = vmatprep.subr.bf16.mxu0 %v942
        %1223 = vmatpush2.bf16.msra.mxu0 %v941
        %1224 = vmatprep.subr.bf16.mxu0 %v938
        %1225 = vmatpush2.bf16.msra.mxu0 %v937
        %1226 = vmatprep.subr.bf16.mxu0 %v934
        %1227 = vmatpush2.bf16.msra.mxu0 %v933
        %1228 = vmatprep.subr.bf16.mxu0 %v930
        %1229 = vmatpush2.bf16.msra.mxu0 %v929
        %1230 = vmatprep.subr.bf16.mxu0 %v926
        %1231 = vmatpush2.bf16.msra.mxu0 %v925
        %1232 = vmatprep.subr.bf16.mxu0 %v922
        %1233 = vmatpush2.bf16.msra.mxu0 %v921
        %1234 = vmatprep.mubr.bf16.mxu0 %v288
        %1235 = vmatmul.mubr.bf16.gmra.mxu0 %v287
        %v1236 = vpop.f32.mrf.mxu0
        %v1237 = vadd.f32 %v1196, %v1236
        %v1238 = vpop.f32.mrf.mxu0
        %v1239 = vadd.f32 %v1198, %v1238
        %v1240 = vpop.f32.mrf.mxu0
        %v1241 = vpop.f32.mrf.mxu0
        %1242 = vdwg.mxu0
        %v1243 = vmax.f32 %v1155, 0.0
        %v1244 = vmax.f32 %v1157, 0.0
        %v1245 = vmax.f32 %v1237, 0.0
        %v1246 = vmax.f32 %v1239, 0.0
        %v1247 = vpack.c.bf16 %v1243, %v1243
        %v1248 = vpack.c.bf16 %v1244, %v1244
        %v1249 = vpack.c.bf16 %v1245, %v1245
        %v1250 = vpack.c.bf16 %v1246, %v1246
        %v1251 = vld [vmem:[#allocation4] sm:$0xff]
        %v1252 = vld [vmem:[#allocation4 + $0x8] sm:$0xff]
        %v1253 = vld [vmem:[#allocation4 + $0x10] sm:$0xff]
        %v1254 = vld [vmem:[#allocation4 + $0x18] sm:$0xff]
        %v1255 = vld [vmem:[#allocation4 + $0x20] sm:$0xff]
        %v1256 = vld [vmem:[#allocation4 + $0x28] sm:$0xff]
        %v1257 = vld [vmem:[#allocation4 + $0x30] sm:$0xff]
        %v1258 = vld [vmem:[#allocation4 + $0x38] sm:$0xff]
        %v1259 = vld [vmem:[#allocation4 + $0x40] sm:$0xff]
        %v1260 = vld [vmem:[#allocation4 + $0x48] sm:$0xff]
        %v1261 = vld [vmem:[#allocation4 + $0x50] sm:$0xff]
        %v1262 = vld [vmem:[#allocation4 + $0x58] sm:$0xff]
        %v1263 = vld [vmem:[#allocation4 + $0x60] sm:$0xff]
        %v1264 = vld [vmem:[#allocation4 + $0x68] sm:$0xff]
        %v1265 = vld [vmem:[#allocation4 + $0x70] sm:$0xff]
        %v1266 = vld [vmem:[#allocation4 + $0x78] sm:$0xff]
        %v1267 = vld [vmem:[#allocation4 + $0x80] sm:$0xff]
        %v1268 = vld [vmem:[#allocation4 + $0x88] sm:$0xff]
        %v1269 = vld [vmem:[#allocation4 + $0x90] sm:$0xff]
        %v1270 = vld [vmem:[#allocation4 + $0x98] sm:$0xff]
        %v1271 = vld [vmem:[#allocation4 + $0xa0] sm:$0xff]
        %v1272 = vld [vmem:[#allocation4 + $0xa8] sm:$0xff]
        %v1273 = vld [vmem:[#allocation4 + $0xb0] sm:$0xff]
        %v1274 = vld [vmem:[#allocation4 + $0xb8] sm:$0xff]
        %v1275 = vld [vmem:[#allocation4 + $0xc0] sm:$0xff]
        %v1276 = vld [vmem:[#allocation4 + $0xc8] sm:$0xff]
        %v1277 = vld [vmem:[#allocation4 + $0xd0] sm:$0xff]
        %v1278 = vld [vmem:[#allocation4 + $0xd8] sm:$0xff]
        %v1279 = vld [vmem:[#allocation4 + $0xe0] sm:$0xff]
        %v1280 = vld [vmem:[#allocation4 + $0xe8] sm:$0xff]
        %v1281 = vld [vmem:[#allocation4 + $0xf0] sm:$0xff]
        %v1282 = vld [vmem:[#allocation4 + $0xf8] sm:$0xff]
        %v1283 = vld [vmem:[#allocation4 + $0x100] sm:$0xff]
        %v1284 = vld [vmem:[#allocation4 + $0x108] sm:$0xff]
        %v1285 = vld [vmem:[#allocation4 + $0x110] sm:$0xff]
        %v1286 = vld [vmem:[#allocation4 + $0x118] sm:$0xff]
        %v1287 = vld [vmem:[#allocation4 + $0x120] sm:$0xff]
        %v1288 = vld [vmem:[#allocation4 + $0x128] sm:$0xff]
        %v1289 = vld [vmem:[#allocation4 + $0x130] sm:$0xff]
        %v1290 = vld [vmem:[#allocation4 + $0x138] sm:$0xff]
        %v1291 = vld [vmem:[#allocation4 + $0x140] sm:$0xff]
        %v1292 = vld [vmem:[#allocation4 + $0x148] sm:$0xff]
        %v1293 = vld [vmem:[#allocation4 + $0x150] sm:$0xff]
        %v1294 = vld [vmem:[#allocation4 + $0x158] sm:$0xff]
        %v1295 = vld [vmem:[#allocation4 + $0x160] sm:$0xff]
        %v1296 = vld [vmem:[#allocation4 + $0x168] sm:$0xff]
        %v1297 = vld [vmem:[#allocation4 + $0x170] sm:$0xff]
        %v1298 = vld [vmem:[#allocation4 + $0x178] sm:$0xff]
        %v1299 = vld [vmem:[#allocation4 + $0x180] sm:$0xff]
        %v1300 = vld [vmem:[#allocation4 + $0x188] sm:$0xff]
        %v1301 = vld [vmem:[#allocation4 + $0x190] sm:$0xff]
        %v1302 = vld [vmem:[#allocation4 + $0x198] sm:$0xff]
        %v1303 = vld [vmem:[#allocation4 + $0x1a0] sm:$0xff]
        %v1304 = vld [vmem:[#allocation4 + $0x1a8] sm:$0xff]
        %v1305 = vld [vmem:[#allocation4 + $0x1b0] sm:$0xff]
        %v1306 = vld [vmem:[#allocation4 + $0x1b8] sm:$0xff]
        %v1307 = vld [vmem:[#allocation4 + $0x1c0] sm:$0xff]
        %v1308 = vld [vmem:[#allocation4 + $0x1c8] sm:$0xff]
        %v1309 = vld [vmem:[#allocation4 + $0x1d0] sm:$0xff]
        %v1310 = vld [vmem:[#allocation4 + $0x1d8] sm:$0xff]
        %v1311 = vld [vmem:[#allocation4 + $0x1e0] sm:$0xff]
        %v1312 = vld [vmem:[#allocation4 + $0x1e8] sm:$0xff]
        %v1313 = vld [vmem:[#allocation4 + $0x1f0] sm:$0xff]
        %v1314 = vld [vmem:[#allocation4 + $0x1f8] sm:$0xff]
        %v1315 = vld [vmem:[#allocation4 + $0x200] sm:$0xff]
        %v1316 = vld [vmem:[#allocation4 + $0x208] sm:$0xff]
        %v1317 = vld [vmem:[#allocation4 + $0x210] sm:$0xff]
        %v1318 = vld [vmem:[#allocation4 + $0x218] sm:$0xff]
        %v1319 = vld [vmem:[#allocation4 + $0x220] sm:$0xff]
        %v1320 = vld [vmem:[#allocation4 + $0x228] sm:$0xff]
        %v1321 = vld [vmem:[#allocation4 + $0x230] sm:$0xff]
        %v1322 = vld [vmem:[#allocation4 + $0x238] sm:$0xff]
        %v1323 = vld [vmem:[#allocation4 + $0x240] sm:$0xff]
        %v1324 = vld [vmem:[#allocation4 + $0x248] sm:$0xff]
        %v1325 = vld [vmem:[#allocation4 + $0x250] sm:$0xff]
        %v1326 = vld [vmem:[#allocation4 + $0x258] sm:$0xff]
        %v1327 = vld [vmem:[#allocation4 + $0x260] sm:$0xff]
        %v1328 = vld [vmem:[#allocation4 + $0x268] sm:$0xff]
        %v1329 = vld [vmem:[#allocation4 + $0x270] sm:$0xff]
        %v1330 = vld [vmem:[#allocation4 + $0x278] sm:$0xff]
        %v1331 = vld [vmem:[#allocation4 + $0x280] sm:$0xff]
        %v1332 = vld [vmem:[#allocation4 + $0x288] sm:$0xff]
        %v1333 = vld [vmem:[#allocation4 + $0x290] sm:$0xff]
        %v1334 = vld [vmem:[#allocation4 + $0x298] sm:$0xff]
        %v1335 = vld [vmem:[#allocation4 + $0x2a0] sm:$0xff]
        %v1336 = vld [vmem:[#allocation4 + $0x2a8] sm:$0xff]
        %v1337 = vld [vmem:[#allocation4 + $0x2b0] sm:$0xff]
        %v1338 = vld [vmem:[#allocation4 + $0x2b8] sm:$0xff]
        %v1339 = vld [vmem:[#allocation4 + $0x2c0] sm:$0xff]
        %v1340 = vld [vmem:[#allocation4 + $0x2c8] sm:$0xff]
        %v1341 = vld [vmem:[#allocation4 + $0x2d0] sm:$0xff]
        %v1342 = vld [vmem:[#allocation4 + $0x2d8] sm:$0xff]
        %v1343 = vld [vmem:[#allocation4 + $0x2e0] sm:$0xff]
        %v1344 = vld [vmem:[#allocation4 + $0x2e8] sm:$0xff]
        %v1345 = vld [vmem:[#allocation4 + $0x2f0] sm:$0xff]
        %v1346 = vld [vmem:[#allocation4 + $0x2f8] sm:$0xff]
        %v1347 = vld [vmem:[#allocation4 + $0x300] sm:$0xff]
        %v1348 = vld [vmem:[#allocation4 + $0x308] sm:$0xff]
        %v1349 = vld [vmem:[#allocation4 + $0x310] sm:$0xff]
        %v1350 = vld [vmem:[#allocation4 + $0x318] sm:$0xff]
        %v1351 = vld [vmem:[#allocation4 + $0x320] sm:$0xff]
        %v1352 = vld [vmem:[#allocation4 + $0x328] sm:$0xff]
        %v1353 = vld [vmem:[#allocation4 + $0x330] sm:$0xff]
        %v1354 = vld [vmem:[#allocation4 + $0x338] sm:$0xff]
        %v1355 = vld [vmem:[#allocation4 + $0x340] sm:$0xff]
        %v1356 = vld [vmem:[#allocation4 + $0x348] sm:$0xff]
        %v1357 = vld [vmem:[#allocation4 + $0x350] sm:$0xff]
        %v1358 = vld [vmem:[#allocation4 + $0x358] sm:$0xff]
        %v1359 = vld [vmem:[#allocation4 + $0x360] sm:$0xff]
        %v1360 = vld [vmem:[#allocation4 + $0x368] sm:$0xff]
        %v1361 = vld [vmem:[#allocation4 + $0x370] sm:$0xff]
        %v1362 = vld [vmem:[#allocation4 + $0x378] sm:$0xff]
        %v1363 = vld [vmem:[#allocation4 + $0x380] sm:$0xff]
        %v1364 = vld [vmem:[#allocation4 + $0x388] sm:$0xff]
        %v1365 = vld [vmem:[#allocation4 + $0x390] sm:$0xff]
        %v1366 = vld [vmem:[#allocation4 + $0x398] sm:$0xff]
        %v1367 = vld [vmem:[#allocation4 + $0x3a0] sm:$0xff]
        %v1368 = vld [vmem:[#allocation4 + $0x3a8] sm:$0xff]
        %v1369 = vld [vmem:[#allocation4 + $0x3b0] sm:$0xff]
        %v1370 = vld [vmem:[#allocation4 + $0x3b8] sm:$0xff]
        %v1371 = vld [vmem:[#allocation4 + $0x3c0] sm:$0xff]
        %v1372 = vld [vmem:[#allocation4 + $0x3c8] sm:$0xff]
        %v1373 = vld [vmem:[#allocation4 + $0x3d0] sm:$0xff]
        %v1374 = vld [vmem:[#allocation4 + $0x3d8] sm:$0xff]
        %v1375 = vld [vmem:[#allocation4 + $0x3e0] sm:$0xff]
        %v1376 = vld [vmem:[#allocation4 + $0x3e8] sm:$0xff]
        %v1377 = vld [vmem:[#allocation4 + $0x3f0] sm:$0xff]
        %v1378 = vld [vmem:[#allocation4 + $0x3f8] sm:$0xff]
        %v1379 = vld [vmem:[%s4] sm:$0xf]
        %v1381 = vlaneseq
        %v1382 = vshrl.u32 %v1381, 7
        %v1383 = vsub.s32 0, %v1382
        %v1384 = vrot.slane %v1379, %v1383
        %v1385 = vlaneseq
        %v1386 = vshrl.u32 %v1385, 7
        %v1387 = vsub.s32 1, %v1386
        %v1388 = vrot.slane %v1379, %v1387
        %v1389 = vlaneseq
        %v1390 = vshrl.u32 %v1389, 7
        %v1391 = vsub.s32 2, %v1390
        %v1392 = vrot.slane %v1379, %v1391
        %v1393 = vlaneseq
        %v1394 = vshrl.u32 %v1393, 7
        %v1395 = vsub.s32 3, %v1394
        %v1396 = vrot.slane %v1379, %v1395
        %v1529 = vunpack.c.l.b16 %v1251
        %v1530 = vunpack.c.h.b16 %v1251
        %v1531 = vunpack.c.l.b16 %v1252
        %v1532 = vunpack.c.h.b16 %v1252
        %v1533 = vunpack.c.l.b16 %v1253
        %v1534 = vunpack.c.h.b16 %v1253
        %v1535 = vunpack.c.l.b16 %v1254
        %v1536 = vunpack.c.h.b16 %v1254
        %v1537 = vunpack.c.l.b16 %v1255
        %v1538 = vunpack.c.h.b16 %v1255
        %v1539 = vunpack.c.l.b16 %v1256
        %v1540 = vunpack.c.h.b16 %v1256
        %v1541 = vunpack.c.l.b16 %v1257
        %v1542 = vunpack.c.h.b16 %v1257
        %v1543 = vunpack.c.l.b16 %v1258
        %v1544 = vunpack.c.h.b16 %v1258
        %v1545 = vunpack.c.l.b16 %v1259
        %v1546 = vunpack.c.h.b16 %v1259
        %v1547 = vunpack.c.l.b16 %v1260
        %v1548 = vunpack.c.h.b16 %v1260
        %v1549 = vunpack.c.l.b16 %v1261
        %v1550 = vunpack.c.h.b16 %v1261
        %v1551 = vunpack.c.l.b16 %v1262
        %v1552 = vunpack.c.h.b16 %v1262
        %v1553 = vunpack.c.l.b16 %v1263
        %v1554 = vunpack.c.h.b16 %v1263
        %v1555 = vunpack.c.l.b16 %v1264
        %v1556 = vunpack.c.h.b16 %v1264
        %v1557 = vunpack.c.l.b16 %v1265
        %v1558 = vunpack.c.h.b16 %v1265
        %v1559 = vunpack.c.l.b16 %v1266
        %v1560 = vunpack.c.h.b16 %v1266
        %v1561 = vunpack.c.l.b16 %v1267
        %v1562 = vunpack.c.h.b16 %v1267
        %v1563 = vunpack.c.l.b16 %v1268
        %v1564 = vunpack.c.h.b16 %v1268
        %v1565 = vunpack.c.l.b16 %v1269
        %v1566 = vunpack.c.h.b16 %v1269
        %v1567 = vunpack.c.l.b16 %v1270
        %v1568 = vunpack.c.h.b16 %v1270
        %v1569 = vunpack.c.l.b16 %v1271
        %v1570 = vunpack.c.h.b16 %v1271
        %v1571 = vunpack.c.l.b16 %v1272
        %v1572 = vunpack.c.h.b16 %v1272
        %v1573 = vunpack.c.l.b16 %v1273
        %v1574 = vunpack.c.h.b16 %v1273
        %v1575 = vunpack.c.l.b16 %v1274
        %v1576 = vunpack.c.h.b16 %v1274
        %v1577 = vunpack.c.l.b16 %v1275
        %v1578 = vunpack.c.h.b16 %v1275
        %v1579 = vunpack.c.l.b16 %v1276
        %v1580 = vunpack.c.h.b16 %v1276
        %v1581 = vunpack.c.l.b16 %v1277
        %v1582 = vunpack.c.h.b16 %v1277
        %v1583 = vunpack.c.l.b16 %v1278
        %v1584 = vunpack.c.h.b16 %v1278
        %v1585 = vunpack.c.l.b16 %v1279
        %v1586 = vunpack.c.h.b16 %v1279
        %v1587 = vunpack.c.l.b16 %v1280
        %v1588 = vunpack.c.h.b16 %v1280
        %v1589 = vunpack.c.l.b16 %v1281
        %v1590 = vunpack.c.h.b16 %v1281
        %v1591 = vunpack.c.l.b16 %v1282
        %v1592 = vunpack.c.h.b16 %v1282
        %v1593 = vunpack.c.l.b16 %v1283
        %v1594 = vunpack.c.h.b16 %v1283
        %v1595 = vunpack.c.l.b16 %v1284
        %v1596 = vunpack.c.h.b16 %v1284
        %v1597 = vunpack.c.l.b16 %v1285
        %v1598 = vunpack.c.h.b16 %v1285
        %v1599 = vunpack.c.l.b16 %v1286
        %v1600 = vunpack.c.h.b16 %v1286
        %v1601 = vunpack.c.l.b16 %v1287
        %v1602 = vunpack.c.h.b16 %v1287
        %v1603 = vunpack.c.l.b16 %v1288
        %v1604 = vunpack.c.h.b16 %v1288
        %v1605 = vunpack.c.l.b16 %v1289
        %v1606 = vunpack.c.h.b16 %v1289
        %v1607 = vunpack.c.l.b16 %v1290
        %v1608 = vunpack.c.h.b16 %v1290
        %v1609 = vunpack.c.l.b16 %v1291
        %v1610 = vunpack.c.h.b16 %v1291
        %v1611 = vunpack.c.l.b16 %v1292
        %v1612 = vunpack.c.h.b16 %v1292
        %v1613 = vunpack.c.l.b16 %v1293
        %v1614 = vunpack.c.h.b16 %v1293
        %v1615 = vunpack.c.l.b16 %v1294
        %v1616 = vunpack.c.h.b16 %v1294
        %v1617 = vunpack.c.l.b16 %v1295
        %v1618 = vunpack.c.h.b16 %v1295
        %v1619 = vunpack.c.l.b16 %v1296
        %v1620 = vunpack.c.h.b16 %v1296
        %v1621 = vunpack.c.l.b16 %v1297
        %v1622 = vunpack.c.h.b16 %v1297
        %v1623 = vunpack.c.l.b16 %v1298
        %v1624 = vunpack.c.h.b16 %v1298
        %v1625 = vunpack.c.l.b16 %v1299
        %v1626 = vunpack.c.h.b16 %v1299
        %v1627 = vunpack.c.l.b16 %v1300
        %v1628 = vunpack.c.h.b16 %v1300
        %v1629 = vunpack.c.l.b16 %v1301
        %v1630 = vunpack.c.h.b16 %v1301
        %v1631 = vunpack.c.l.b16 %v1302
        %v1632 = vunpack.c.h.b16 %v1302
        %v1633 = vunpack.c.l.b16 %v1303
        %v1634 = vunpack.c.h.b16 %v1303
        %v1635 = vunpack.c.l.b16 %v1304
        %v1636 = vunpack.c.h.b16 %v1304
        %v1637 = vunpack.c.l.b16 %v1305
        %v1638 = vunpack.c.h.b16 %v1305
        %v1639 = vunpack.c.l.b16 %v1306
        %v1640 = vunpack.c.h.b16 %v1306
        %v1641 = vunpack.c.l.b16 %v1307
        %v1642 = vunpack.c.h.b16 %v1307
        %v1643 = vunpack.c.l.b16 %v1308
        %v1644 = vunpack.c.h.b16 %v1308
        %v1645 = vunpack.c.l.b16 %v1309
        %v1646 = vunpack.c.h.b16 %v1309
        %v1647 = vunpack.c.l.b16 %v1310
        %v1648 = vunpack.c.h.b16 %v1310
        %v1649 = vunpack.c.l.b16 %v1311
        %v1650 = vunpack.c.h.b16 %v1311
        %v1651 = vunpack.c.l.b16 %v1312
        %v1652 = vunpack.c.h.b16 %v1312
        %v1653 = vunpack.c.l.b16 %v1313
        %v1654 = vunpack.c.h.b16 %v1313
        %v1655 = vunpack.c.l.b16 %v1314
        %v1656 = vunpack.c.h.b16 %v1314
        %v1657 = vunpack.c.l.b16 %v1315
        %v1658 = vunpack.c.h.b16 %v1315
        %v1659 = vunpack.c.l.b16 %v1316
        %v1660 = vunpack.c.h.b16 %v1316
        %v1661 = vunpack.c.l.b16 %v1317
        %v1662 = vunpack.c.h.b16 %v1317
        %v1663 = vunpack.c.l.b16 %v1318
        %v1664 = vunpack.c.h.b16 %v1318
        %v1665 = vunpack.c.l.b16 %v1319
        %v1666 = vunpack.c.h.b16 %v1319
        %v1667 = vunpack.c.l.b16 %v1320
        %v1668 = vunpack.c.h.b16 %v1320
        %v1669 = vunpack.c.l.b16 %v1321
        %v1670 = vunpack.c.h.b16 %v1321
        %v1671 = vunpack.c.l.b16 %v1322
        %v1672 = vunpack.c.h.b16 %v1322
        %v1673 = vunpack.c.l.b16 %v1323
        %v1674 = vunpack.c.h.b16 %v1323
        %v1675 = vunpack.c.l.b16 %v1324
        %v1676 = vunpack.c.h.b16 %v1324
        %v1677 = vunpack.c.l.b16 %v1325
        %v1678 = vunpack.c.h.b16 %v1325
        %v1679 = vunpack.c.l.b16 %v1326
        %v1680 = vunpack.c.h.b16 %v1326
        %v1681 = vunpack.c.l.b16 %v1327
        %v1682 = vunpack.c.h.b16 %v1327
        %v1683 = vunpack.c.l.b16 %v1328
        %v1684 = vunpack.c.h.b16 %v1328
        %v1685 = vunpack.c.l.b16 %v1329
        %v1686 = vunpack.c.h.b16 %v1329
        %v1687 = vunpack.c.l.b16 %v1330
        %v1688 = vunpack.c.h.b16 %v1330
        %v1689 = vunpack.c.l.b16 %v1331
        %v1690 = vunpack.c.h.b16 %v1331
        %v1691 = vunpack.c.l.b16 %v1332
        %v1692 = vunpack.c.h.b16 %v1332
        %v1693 = vunpack.c.l.b16 %v1333
        %v1694 = vunpack.c.h.b16 %v1333
        %v1695 = vunpack.c.l.b16 %v1334
        %v1696 = vunpack.c.h.b16 %v1334
        %v1697 = vunpack.c.l.b16 %v1335
        %v1698 = vunpack.c.h.b16 %v1335
        %v1699 = vunpack.c.l.b16 %v1336
        %v1700 = vunpack.c.h.b16 %v1336
        %v1701 = vunpack.c.l.b16 %v1337
        %v1702 = vunpack.c.h.b16 %v1337
        %v1703 = vunpack.c.l.b16 %v1338
        %v1704 = vunpack.c.h.b16 %v1338
        %v1705 = vunpack.c.l.b16 %v1339
        %v1706 = vunpack.c.h.b16 %v1339
        %v1707 = vunpack.c.l.b16 %v1340
        %v1708 = vunpack.c.h.b16 %v1340
        %v1709 = vunpack.c.l.b16 %v1341
        %v1710 = vunpack.c.h.b16 %v1341
        %v1711 = vunpack.c.l.b16 %v1342
        %v1712 = vunpack.c.h.b16 %v1342
        %v1713 = vunpack.c.l.b16 %v1343
        %v1714 = vunpack.c.h.b16 %v1343
        %v1715 = vunpack.c.l.b16 %v1344
        %v1716 = vunpack.c.h.b16 %v1344
        %v1717 = vunpack.c.l.b16 %v1345
        %v1718 = vunpack.c.h.b16 %v1345
        %v1719 = vunpack.c.l.b16 %v1346
        %v1720 = vunpack.c.h.b16 %v1346
        %v1721 = vunpack.c.l.b16 %v1347
        %v1722 = vunpack.c.h.b16 %v1347
        %v1723 = vunpack.c.l.b16 %v1348
        %v1724 = vunpack.c.h.b16 %v1348
        %v1725 = vunpack.c.l.b16 %v1349
        %v1726 = vunpack.c.h.b16 %v1349
        %v1727 = vunpack.c.l.b16 %v1350
        %v1728 = vunpack.c.h.b16 %v1350
        %v1729 = vunpack.c.l.b16 %v1351
        %v1730 = vunpack.c.h.b16 %v1351
        %v1731 = vunpack.c.l.b16 %v1352
        %v1732 = vunpack.c.h.b16 %v1352
        %v1733 = vunpack.c.l.b16 %v1353
        %v1734 = vunpack.c.h.b16 %v1353
        %v1735 = vunpack.c.l.b16 %v1354
        %v1736 = vunpack.c.h.b16 %v1354
        %v1737 = vunpack.c.l.b16 %v1355
        %v1738 = vunpack.c.h.b16 %v1355
        %v1739 = vunpack.c.l.b16 %v1356
        %v1740 = vunpack.c.h.b16 %v1356
        %v1741 = vunpack.c.l.b16 %v1357
        %v1742 = vunpack.c.h.b16 %v1357
        %v1743 = vunpack.c.l.b16 %v1358
        %v1744 = vunpack.c.h.b16 %v1358
        %v1745 = vunpack.c.l.b16 %v1359
        %v1746 = vunpack.c.h.b16 %v1359
        %v1747 = vunpack.c.l.b16 %v1360
        %v1748 = vunpack.c.h.b16 %v1360
        %v1749 = vunpack.c.l.b16 %v1361
        %v1750 = vunpack.c.h.b16 %v1361
        %v1751 = vunpack.c.l.b16 %v1362
        %v1752 = vunpack.c.h.b16 %v1362
        %v1753 = vunpack.c.l.b16 %v1363
        %v1754 = vunpack.c.h.b16 %v1363
        %v1755 = vunpack.c.l.b16 %v1364
        %v1756 = vunpack.c.h.b16 %v1364
        %v1757 = vunpack.c.l.b16 %v1365
        %v1758 = vunpack.c.h.b16 %v1365
        %v1759 = vunpack.c.l.b16 %v1366
        %v1760 = vunpack.c.h.b16 %v1366
        %v1761 = vunpack.c.l.b16 %v1367
        %v1762 = vunpack.c.h.b16 %v1367
        %v1763 = vunpack.c.l.b16 %v1368
        %v1764 = vunpack.c.h.b16 %v1368
        %v1765 = vunpack.c.l.b16 %v1369
        %v1766 = vunpack.c.h.b16 %v1369
        %v1767 = vunpack.c.l.b16 %v1370
        %v1768 = vunpack.c.h.b16 %v1370
        %v1769 = vunpack.c.l.b16 %v1371
        %v1770 = vunpack.c.h.b16 %v1371
        %v1771 = vunpack.c.l.b16 %v1372
        %v1772 = vunpack.c.h.b16 %v1372
        %v1773 = vunpack.c.l.b16 %v1373
        %v1774 = vunpack.c.h.b16 %v1373
        %v1775 = vunpack.c.l.b16 %v1374
        %v1776 = vunpack.c.h.b16 %v1374
        %v1777 = vunpack.c.l.b16 %v1375
        %v1778 = vunpack.c.h.b16 %v1375
        %v1779 = vunpack.c.l.b16 %v1376
        %v1780 = vunpack.c.h.b16 %v1376
        %v1781 = vunpack.c.l.b16 %v1377
        %v1782 = vunpack.c.h.b16 %v1377
        %v1783 = vunpack.c.l.b16 %v1378
        %v1784 = vunpack.c.h.b16 %v1378
        %v1785 = vpack.c.b16 %v1533, %v1529
        %v1786 = vpack.c.b16 %v1534, %v1530
        %v1787 = vpack.c.b16 %v1535, %v1531
        %v1788 = vpack.c.b16 %v1536, %v1532
        %v1789 = vpack.c.b16 %v1541, %v1537
        %v1790 = vpack.c.b16 %v1542, %v1538
        %v1791 = vpack.c.b16 %v1543, %v1539
        %v1792 = vpack.c.b16 %v1544, %v1540
        %v1793 = vpack.c.b16 %v1549, %v1545
        %v1794 = vpack.c.b16 %v1550, %v1546
        %v1795 = vpack.c.b16 %v1551, %v1547
        %v1796 = vpack.c.b16 %v1552, %v1548
        %v1797 = vpack.c.b16 %v1557, %v1553
        %v1798 = vpack.c.b16 %v1558, %v1554
        %v1799 = vpack.c.b16 %v1559, %v1555
        %v1800 = vpack.c.b16 %v1560, %v1556
        %v1801 = vpack.c.b16 %v1565, %v1561
        %v1802 = vpack.c.b16 %v1566, %v1562
        %v1803 = vpack.c.b16 %v1567, %v1563
        %v1804 = vpack.c.b16 %v1568, %v1564
        %v1805 = vpack.c.b16 %v1573, %v1569
        %v1806 = vpack.c.b16 %v1574, %v1570
        %v1807 = vpack.c.b16 %v1575, %v1571
        %v1808 = vpack.c.b16 %v1576, %v1572
        %v1809 = vpack.c.b16 %v1581, %v1577
        %v1810 = vpack.c.b16 %v1582, %v1578
        %v1811 = vpack.c.b16 %v1583, %v1579
        %v1812 = vpack.c.b16 %v1584, %v1580
        %v1813 = vpack.c.b16 %v1589, %v1585
        %v1814 = vpack.c.b16 %v1590, %v1586
        %v1815 = vpack.c.b16 %v1591, %v1587
        %v1816 = vpack.c.b16 %v1592, %v1588
        %v1817 = vpack.c.b16 %v1597, %v1593
        %v1818 = vpack.c.b16 %v1598, %v1594
        %v1819 = vpack.c.b16 %v1599, %v1595
        %v1820 = vpack.c.b16 %v1600, %v1596
        %v1821 = vpack.c.b16 %v1605, %v1601
        %v1822 = vpack.c.b16 %v1606, %v1602
        %v1823 = vpack.c.b16 %v1607, %v1603
        %v1824 = vpack.c.b16 %v1608, %v1604
        %v1825 = vpack.c.b16 %v1613, %v1609
        %v1826 = vpack.c.b16 %v1614, %v1610
        %v1827 = vpack.c.b16 %v1615, %v1611
        %v1828 = vpack.c.b16 %v1616, %v1612
        %v1829 = vpack.c.b16 %v1621, %v1617
        %v1830 = vpack.c.b16 %v1622, %v1618
        %v1831 = vpack.c.b16 %v1623, %v1619
        %v1832 = vpack.c.b16 %v1624, %v1620
        %v1833 = vpack.c.b16 %v1629, %v1625
        %v1834 = vpack.c.b16 %v1630, %v1626
        %v1835 = vpack.c.b16 %v1631, %v1627
        %v1836 = vpack.c.b16 %v1632, %v1628
        %v1837 = vpack.c.b16 %v1637, %v1633
        %v1838 = vpack.c.b16 %v1638, %v1634
        %v1839 = vpack.c.b16 %v1639, %v1635
        %v1840 = vpack.c.b16 %v1640, %v1636
        %v1841 = vpack.c.b16 %v1645, %v1641
        %v1842 = vpack.c.b16 %v1646, %v1642
        %v1843 = vpack.c.b16 %v1647, %v1643
        %v1844 = vpack.c.b16 %v1648, %v1644
        %v1845 = vpack.c.b16 %v1653, %v1649
        %v1846 = vpack.c.b16 %v1654, %v1650
        %v1847 = vpack.c.b16 %v1655, %v1651
        %v1848 = vpack.c.b16 %v1656, %v1652
        %v1849 = vpack.c.b16 %v1661, %v1657
        %v1850 = vpack.c.b16 %v1662, %v1658
        %v1851 = vpack.c.b16 %v1663, %v1659
        %v1852 = vpack.c.b16 %v1664, %v1660
        %v1853 = vpack.c.b16 %v1669, %v1665
        %v1854 = vpack.c.b16 %v1670, %v1666
        %v1855 = vpack.c.b16 %v1671, %v1667
        %v1856 = vpack.c.b16 %v1672, %v1668
        %v1857 = vpack.c.b16 %v1677, %v1673
        %v1858 = vpack.c.b16 %v1678, %v1674
        %v1859 = vpack.c.b16 %v1679, %v1675
        %v1860 = vpack.c.b16 %v1680, %v1676
        %v1861 = vpack.c.b16 %v1685, %v1681
        %v1862 = vpack.c.b16 %v1686, %v1682
        %v1863 = vpack.c.b16 %v1687, %v1683
        %v1864 = vpack.c.b16 %v1688, %v1684
        %v1865 = vpack.c.b16 %v1693, %v1689
        %v1866 = vpack.c.b16 %v1694, %v1690
        %v1867 = vpack.c.b16 %v1695, %v1691
        %v1868 = vpack.c.b16 %v1696, %v1692
        %v1869 = vpack.c.b16 %v1701, %v1697
        %v1870 = vpack.c.b16 %v1702, %v1698
        %v1871 = vpack.c.b16 %v1703, %v1699
        %v1872 = vpack.c.b16 %v1704, %v1700
        %v1873 = vpack.c.b16 %v1709, %v1705
        %v1874 = vpack.c.b16 %v1710, %v1706
        %v1875 = vpack.c.b16 %v1711, %v1707
        %v1876 = vpack.c.b16 %v1712, %v1708
        %v1877 = vpack.c.b16 %v1717, %v1713
        %v1878 = vpack.c.b16 %v1718, %v1714
        %v1879 = vpack.c.b16 %v1719, %v1715
        %v1880 = vpack.c.b16 %v1720, %v1716
        %v1881 = vpack.c.b16 %v1725, %v1721
        %v1882 = vpack.c.b16 %v1726, %v1722
        %v1883 = vpack.c.b16 %v1727, %v1723
        %v1884 = vpack.c.b16 %v1728, %v1724
        %v1885 = vpack.c.b16 %v1733, %v1729
        %v1886 = vpack.c.b16 %v1734, %v1730
        %v1887 = vpack.c.b16 %v1735, %v1731
        %v1888 = vpack.c.b16 %v1736, %v1732
        %v1889 = vpack.c.b16 %v1741, %v1737
        %v1890 = vpack.c.b16 %v1742, %v1738
        %v1891 = vpack.c.b16 %v1743, %v1739
        %v1892 = vpack.c.b16 %v1744, %v1740
        %v1893 = vpack.c.b16 %v1749, %v1745
        %v1894 = vpack.c.b16 %v1750, %v1746
        %v1895 = vpack.c.b16 %v1751, %v1747
        %v1896 = vpack.c.b16 %v1752, %v1748
        %v1897 = vpack.c.b16 %v1757, %v1753
        %v1898 = vpack.c.b16 %v1758, %v1754
        %v1899 = vpack.c.b16 %v1759, %v1755
        %v1900 = vpack.c.b16 %v1760, %v1756
        %v1901 = vpack.c.b16 %v1765, %v1761
        %v1902 = vpack.c.b16 %v1766, %v1762
        %v1903 = vpack.c.b16 %v1767, %v1763
        %v1904 = vpack.c.b16 %v1768, %v1764
        %v1905 = vpack.c.b16 %v1773, %v1769
        %v1906 = vpack.c.b16 %v1774, %v1770
        %v1907 = vpack.c.b16 %v1775, %v1771
        %v1908 = vpack.c.b16 %v1776, %v1772
        %v1909 = vpack.c.b16 %v1781, %v1777
        %v1910 = vpack.c.b16 %v1782, %v1778
        %v1911 = vpack.c.b16 %v1783, %v1779
        %v1912 = vpack.c.b16 %v1784, %v1780
        %2041 = vmatprep.subr.bf16.mxu0 %v1814
        %2042 = vmatpush1.bf16.msra.mxu0 %v1813
        %2043 = vmatprep.subr.bf16.mxu0 %v1810
        %2044 = vmatpush1.bf16.msra.mxu0 %v1809
        %2045 = vmatprep.subr.bf16.mxu0 %v1806
        %2046 = vmatpush1.bf16.msra.mxu0 %v1805
        %2047 = vmatprep.subr.bf16.mxu0 %v1802
        %2048 = vmatpush1.bf16.msra.mxu0 %v1801
        %2049 = vmatprep.subr.bf16.mxu0 %v1798
        %2050 = vmatpush1.bf16.msra.mxu0 %v1797
        %2051 = vmatprep.subr.bf16.mxu0 %v1794
        %2052 = vmatpush1.bf16.msra.mxu0 %v1793
        %2053 = vmatprep.subr.bf16.mxu0 %v1790
        %2054 = vmatpush1.bf16.msra.mxu0 %v1789
        %2055 = vmatprep.subr.bf16.mxu0 %v1786
        %2056 = vmatpush1.bf16.msra.mxu0 %v1785
        %2057 = vmatprep.subr.bf16.mxu0 %v1846
        %2058 = vmatpush2.bf16.msra.mxu0 %v1845
        %2059 = vmatprep.subr.bf16.mxu0 %v1842
        %2060 = vmatpush2.bf16.msra.mxu0 %v1841
        %2061 = vmatprep.subr.bf16.mxu0 %v1838
        %2062 = vmatpush2.bf16.msra.mxu0 %v1837
        %2063 = vmatprep.subr.bf16.mxu0 %v1834
        %2064 = vmatpush2.bf16.msra.mxu0 %v1833
        %2065 = vmatprep.subr.bf16.mxu0 %v1830
        %2066 = vmatpush2.bf16.msra.mxu0 %v1829
        %2067 = vmatprep.subr.bf16.mxu0 %v1826
        %2068 = vmatpush2.bf16.msra.mxu0 %v1825
        %2069 = vmatprep.subr.bf16.mxu0 %v1822
        %2070 = vmatpush2.bf16.msra.mxu0 %v1821
        %2071 = vmatprep.subr.bf16.mxu0 %v1818
        %2072 = vmatpush2.bf16.msra.mxu0 %v1817
        %2073 = vmatprep.mubr.bf16.mxu0 %v1248
        %2074 = vmatmul.mubr.bf16.gmra.mxu0 %v1247
        %v2075 = vpop.f32.mrf.mxu0
        %v2076 = vadd.f32 %v1384, %v2075
        %v2077 = vpop.f32.mrf.mxu0
        %v2078 = vadd.f32 %v1388, %v2077
        %v2079 = vpop.f32.mrf.mxu0
        %v2080 = vpop.f32.mrf.mxu0
        %2081 = vdwg.mxu0
        %2082 = vmatprep.subr.bf16.mxu0 %v1878
        %2083 = vmatpush1.bf16.msra.mxu0 %v1877
        %2084 = vmatprep.subr.bf16.mxu0 %v1874
        %2085 = vmatpush1.bf16.msra.mxu0 %v1873
        %2086 = vmatprep.subr.bf16.mxu0 %v1870
        %2087 = vmatpush1.bf16.msra.mxu0 %v1869
        %2088 = vmatprep.subr.bf16.mxu0 %v1866
        %2089 = vmatpush1.bf16.msra.mxu0 %v1865
        %2090 = vmatprep.subr.bf16.mxu0 %v1862
        %2091 = vmatpush1.bf16.msra.mxu0 %v1861
        %2092 = vmatprep.subr.bf16.mxu0 %v1858
        %2093 = vmatpush1.bf16.msra.mxu0 %v1857
        %2094 = vmatprep.subr.bf16.mxu0 %v1854
        %2095 = vmatpush1.bf16.msra.mxu0 %v1853
        %2096 = vmatprep.subr.bf16.mxu0 %v1850
        %2097 = vmatpush1.bf16.msra.mxu0 %v1849
        %2098 = vmatprep.subr.bf16.mxu0 %v1910
        %2099 = vmatpush2.bf16.msra.mxu0 %v1909
        %2100 = vmatprep.subr.bf16.mxu0 %v1906
        %2101 = vmatpush2.bf16.msra.mxu0 %v1905
        %2102 = vmatprep.subr.bf16.mxu0 %v1902
        %2103 = vmatpush2.bf16.msra.mxu0 %v1901
        %2104 = vmatprep.subr.bf16.mxu0 %v1898
        %2105 = vmatpush2.bf16.msra.mxu0 %v1897
        %2106 = vmatprep.subr.bf16.mxu0 %v1894
        %2107 = vmatpush2.bf16.msra.mxu0 %v1893
        %2108 = vmatprep.subr.bf16.mxu0 %v1890
        %2109 = vmatpush2.bf16.msra.mxu0 %v1889
        %2110 = vmatprep.subr.bf16.mxu0 %v1886
        %2111 = vmatpush2.bf16.msra.mxu0 %v1885
        %2112 = vmatprep.subr.bf16.mxu0 %v1882
        %2113 = vmatpush2.bf16.msra.mxu0 %v1881
        %2114 = vmatprep.mubr.bf16.mxu0 %v1250
        %2115 = vmatmul.mubr.bf16.gmra.mxu0 %v1249
        %v2116 = vpop.f32.mrf.mxu0
        %v2117 = vadd.f32 %v2076, %v2116
        %v2118 = vpop.f32.mrf.mxu0
        %v2119 = vadd.f32 %v2078, %v2118
        %v2120 = vpop.f32.mrf.mxu0
        %v2121 = vpop.f32.mrf.mxu0
        %2122 = vdwg.mxu0
        %2123 = vmatprep.subr.bf16.mxu0 %v1816
        %2124 = vmatpush1.bf16.msra.mxu0 %v1815
        %2125 = vmatprep.subr.bf16.mxu0 %v1812
        %2126 = vmatpush1.bf16.msra.mxu0 %v1811
        %2127 = vmatprep.subr.bf16.mxu0 %v1808
        %2128 = vmatpush1.bf16.msra.mxu0 %v1807
        %2129 = vmatprep.subr.bf16.mxu0 %v1804
        %2130 = vmatpush1.bf16.msra.mxu0 %v1803
        %2131 = vmatprep.subr.bf16.mxu0 %v1800
        %2132 = vmatpush1.bf16.msra.mxu0 %v1799
        %2133 = vmatprep.subr.bf16.mxu0 %v1796
        %2134 = vmatpush1.bf16.msra.mxu0 %v1795
        %2135 = vmatprep.subr.bf16.mxu0 %v1792
        %2136 = vmatpush1.bf16.msra.mxu0 %v1791
        %2137 = vmatprep.subr.bf16.mxu0 %v1788
        %2138 = vmatpush1.bf16.msra.mxu0 %v1787
        %2139 = vmatprep.subr.bf16.mxu0 %v1848
        %2140 = vmatpush2.bf16.msra.mxu0 %v1847
        %2141 = vmatprep.subr.bf16.mxu0 %v1844
        %2142 = vmatpush2.bf16.msra.mxu0 %v1843
        %2143 = vmatprep.subr.bf16.mxu0 %v1840
        %2144 = vmatpush2.bf16.msra.mxu0 %v1839
        %2145 = vmatprep.subr.bf16.mxu0 %v1836
        %2146 = vmatpush2.bf16.msra.mxu0 %v1835
        %2147 = vmatprep.subr.bf16.mxu0 %v1832
        %2148 = vmatpush2.bf16.msra.mxu0 %v1831
        %2149 = vmatprep.subr.bf16.mxu0 %v1828
        %2150 = vmatpush2.bf16.msra.mxu0 %v1827
        %2151 = vmatprep.subr.bf16.mxu0 %v1824
        %2152 = vmatpush2.bf16.msra.mxu0 %v1823
        %2153 = vmatprep.subr.bf16.mxu0 %v1820
        %2154 = vmatpush2.bf16.msra.mxu0 %v1819
        %2155 = vmatprep.mubr.bf16.mxu0 %v1248
        %2156 = vmatmul.mubr.bf16.gmra.mxu0 %v1247
        %v2157 = vpop.f32.mrf.mxu0
        %v2158 = vadd.f32 %v1392, %v2157
        %v2159 = vpop.f32.mrf.mxu0
        %v2160 = vadd.f32 %v1396, %v2159
        %v2161 = vpop.f32.mrf.mxu0
        %v2162 = vpop.f32.mrf.mxu0
        %2163 = vdwg.mxu0
        %2164 = vmatprep.subr.bf16.mxu0 %v1880
        %2165 = vmatpush1.bf16.msra.mxu0 %v1879
        %2166 = vmatprep.subr.bf16.mxu0 %v1876
        %2167 = vmatpush1.bf16.msra.mxu0 %v1875
        %2168 = vmatprep.subr.bf16.mxu0 %v1872
        %2169 = vmatpush1.bf16.msra.mxu0 %v1871
        %2170 = vmatprep.subr.bf16.mxu0 %v1868
        %2171 = vmatpush1.bf16.msra.mxu0 %v1867
        %2172 = vmatprep.subr.bf16.mxu0 %v1864
        %2173 = vmatpush1.bf16.msra.mxu0 %v1863
        %2174 = vmatprep.subr.bf16.mxu0 %v1860
        %2175 = vmatpush1.bf16.msra.mxu0 %v1859
        %2176 = vmatprep.subr.bf16.mxu0 %v1856
        %2177 = vmatpush1.bf16.msra.mxu0 %v1855
        %2178 = vmatprep.subr.bf16.mxu0 %v1852
        %2179 = vmatpush1.bf16.msra.mxu0 %v1851
        %2180 = vmatprep.subr.bf16.mxu0 %v1912
        %2181 = vmatpush2.bf16.msra.mxu0 %v1911
        %2182 = vmatprep.subr.bf16.mxu0 %v1908
        %2183 = vmatpush2.bf16.msra.mxu0 %v1907
        %2184 = vmatprep.subr.bf16.mxu0 %v1904
        %2185 = vmatpush2.bf16.msra.mxu0 %v1903
        %2186 = vmatprep.subr.bf16.mxu0 %v1900
        %2187 = vmatpush2.bf16.msra.mxu0 %v1899
        %2188 = vmatprep.subr.bf16.mxu0 %v1896
        %2189 = vmatpush2.bf16.msra.mxu0 %v1895
        %2190 = vmatprep.subr.bf16.mxu0 %v1892
        %2191 = vmatpush2.bf16.msra.mxu0 %v1891
        %2192 = vmatprep.subr.bf16.mxu0 %v1888
        %2193 = vmatpush2.bf16.msra.mxu0 %v1887
        %2194 = vmatprep.subr.bf16.mxu0 %v1884
        %2195 = vmatpush2.bf16.msra.mxu0 %v1883
        %2196 = vmatprep.mubr.bf16.mxu0 %v1250
        %2197 = vmatmul.mubr.bf16.gmra.mxu0 %v1249
        %v2198 = vpop.f32.mrf.mxu0
        %v2199 = vadd.f32 %v2158, %v2198
        %v2200 = vpop.f32.mrf.mxu0
        %v2201 = vadd.f32 %v2160, %v2200
        %v2202 = vpop.f32.mrf.mxu0
        %v2203 = vpop.f32.mrf.mxu0
        %2204 = vdwg.mxu0
        %v2205 = vmax.f32 %v2117, 0.0
        %v2206 = vmax.f32 %v2119, 0.0
        %v2207 = vmax.f32 %v2199, 0.0
        %v2208 = vmax.f32 %v2201, 0.0
        %v2209 = vpack.c.bf16 %v2205, %v2205
        %v2210 = vpack.c.bf16 %v2206, %v2206
        %v2211 = vpack.c.bf16 %v2207, %v2207
        %v2212 = vpack.c.bf16 %v2208, %v2208
        %v2213 = vld [vmem:[%s5] sm:$0xf]
        %v2214 = vld [vmem:[%s5 + $0x4] sm:$0xf]
        %v2215 = vld [vmem:[%s5 + $0x8] sm:$0xf]
        %v2216 = vld [vmem:[%s5 + $0xc] sm:$0xf]
        %v2217 = vld [vmem:[%s5 + $0x10] sm:$0xf]
        %v2218 = vld [vmem:[%s5 + $0x14] sm:$0xf]
        %v2219 = vld [vmem:[%s5 + $0x18] sm:$0xf]
        %v2220 = vld [vmem:[%s5 + $0x1c] sm:$0xf]
        %v2221 = vld [vmem:[%s5 + $0x20] sm:$0xf]
        %v2222 = vld [vmem:[%s5 + $0x24] sm:$0xf]
        %v2223 = vld [vmem:[%s5 + $0x28] sm:$0xf]
        %v2224 = vld [vmem:[%s5 + $0x2c] sm:$0xf]
        %v2225 = vld [vmem:[%s5 + $0x30] sm:$0xf]
        %v2226 = vld [vmem:[%s5 + $0x34] sm:$0xf]
        %v2227 = vld [vmem:[%s5 + $0x38] sm:$0xf]
        %v2228 = vld [vmem:[%s5 + $0x3c] sm:$0xf]
        %v2229 = vld [vmem:[%s5 + $0x40] sm:$0xf]
        %v2230 = vld [vmem:[%s5 + $0x44] sm:$0xf]
        %v2231 = vld [vmem:[%s5 + $0x48] sm:$0xf]
        %v2232 = vld [vmem:[%s5 + $0x4c] sm:$0xf]
        %v2233 = vld [vmem:[%s5 + $0x50] sm:$0xf]
        %v2234 = vld [vmem:[%s5 + $0x54] sm:$0xf]
        %v2235 = vld [vmem:[%s5 + $0x58] sm:$0xf]
        %v2236 = vld [vmem:[%s5 + $0x5c] sm:$0xf]
        %v2237 = vld [vmem:[%s5 + $0x60] sm:$0xf]
        %v2238 = vld [vmem:[%s5 + $0x64] sm:$0xf]
        %v2239 = vld [vmem:[%s5 + $0x68] sm:$0xf]
        %v2240 = vld [vmem:[%s5 + $0x6c] sm:$0xf]
        %v2241 = vld [vmem:[%s5 + $0x70] sm:$0xf]
        %v2242 = vld [vmem:[%s5 + $0x74] sm:$0xf]
        %v2243 = vld [vmem:[%s5 + $0x78] sm:$0xf]
        %v2244 = vld [vmem:[%s5 + $0x7c] sm:$0xf]
        %v2245 = vld [vmem:[%s5 + $0x80] sm:$0xf]
        %v2246 = vld [vmem:[%s5 + $0x84] sm:$0xf]
        %v2247 = vld [vmem:[%s5 + $0x88] sm:$0xf]
        %v2248 = vld [vmem:[%s5 + $0x8c] sm:$0xf]
        %v2249 = vld [vmem:[%s5 + $0x90] sm:$0xf]
        %v2250 = vld [vmem:[%s5 + $0x94] sm:$0xf]
        %v2251 = vld [vmem:[%s5 + $0x98] sm:$0xf]
        %v2252 = vld [vmem:[%s5 + $0x9c] sm:$0xf]
        %v2253 = vld [vmem:[%s5 + $0xa0] sm:$0xf]
        %v2254 = vld [vmem:[%s5 + $0xa4] sm:$0xf]
        %v2255 = vld [vmem:[%s5 + $0xa8] sm:$0xf]
        %v2256 = vld [vmem:[%s5 + $0xac] sm:$0xf]
        %v2257 = vld [vmem:[%s5 + $0xb0] sm:$0xf]
        %v2258 = vld [vmem:[%s5 + $0xb4] sm:$0xf]
        %v2259 = vld [vmem:[%s5 + $0xb8] sm:$0xf]
        %v2260 = vld [vmem:[%s5 + $0xbc] sm:$0xf]
        %v2261 = vld [vmem:[%s5 + $0xc0] sm:$0xf]
        %v2262 = vld [vmem:[%s5 + $0xc4] sm:$0xf]
        %v2263 = vld [vmem:[%s5 + $0xc8] sm:$0xf]
        %v2264 = vld [vmem:[%s5 + $0xcc] sm:$0xf]
        %v2265 = vld [vmem:[%s5 + $0xd0] sm:$0xf]
        %v2266 = vld [vmem:[%s5 + $0xd4] sm:$0xf]
        %v2267 = vld [vmem:[%s5 + $0xd8] sm:$0xf]
        %v2268 = vld [vmem:[%s5 + $0xdc] sm:$0xf]
        %v2269 = vld [vmem:[%s5 + $0xe0] sm:$0xf]
        %v2270 = vld [vmem:[%s5 + $0xe4] sm:$0xf]
        %v2271 = vld [vmem:[%s5 + $0xe8] sm:$0xf]
        %v2272 = vld [vmem:[%s5 + $0xec] sm:$0xf]
        %v2273 = vld [vmem:[%s5 + $0xf0] sm:$0xf]
        %v2274 = vld [vmem:[%s5 + $0xf4] sm:$0xf]
        %v2275 = vld [vmem:[%s5 + $0xf8] sm:$0xf]
        %v2276 = vld [vmem:[%s5 + $0xfc] sm:$0xf]
        %v2341 = vunpack.c.l.b16 %v2213
        %v2342 = vunpack.c.l.b16 %v2214
        %v2343 = vunpack.c.l.b16 %v2215
        %v2344 = vunpack.c.l.b16 %v2216
        %v2345 = vunpack.c.l.b16 %v2217
        %v2346 = vunpack.c.l.b16 %v2218
        %v2347 = vunpack.c.l.b16 %v2219
        %v2348 = vunpack.c.l.b16 %v2220
        %v2349 = vunpack.c.l.b16 %v2221
        %v2350 = vunpack.c.l.b16 %v2222
        %v2351 = vunpack.c.l.b16 %v2223
        %v2352 = vunpack.c.l.b16 %v2224
        %v2353 = vunpack.c.l.b16 %v2225
        %v2354 = vunpack.c.l.b16 %v2226
        %v2355 = vunpack.c.l.b16 %v2227
        %v2356 = vunpack.c.l.b16 %v2228
        %v2357 = vunpack.c.l.b16 %v2229
        %v2358 = vunpack.c.l.b16 %v2230
        %v2359 = vunpack.c.l.b16 %v2231
        %v2360 = vunpack.c.l.b16 %v2232
        %v2361 = vunpack.c.l.b16 %v2233
        %v2362 = vunpack.c.l.b16 %v2234
        %v2363 = vunpack.c.l.b16 %v2235
        %v2364 = vunpack.c.l.b16 %v2236
        %v2365 = vunpack.c.l.b16 %v2237
        %v2366 = vunpack.c.l.b16 %v2238
        %v2367 = vunpack.c.l.b16 %v2239
        %v2368 = vunpack.c.l.b16 %v2240
        %v2369 = vunpack.c.l.b16 %v2241
        %v2370 = vunpack.c.l.b16 %v2242
        %v2371 = vunpack.c.l.b16 %v2243
        %v2372 = vunpack.c.l.b16 %v2244
        %v2373 = vunpack.c.l.b16 %v2245
        %v2374 = vunpack.c.l.b16 %v2246
        %v2375 = vunpack.c.l.b16 %v2247
        %v2376 = vunpack.c.l.b16 %v2248
        %v2377 = vunpack.c.l.b16 %v2249
        %v2378 = vunpack.c.l.b16 %v2250
        %v2379 = vunpack.c.l.b16 %v2251
        %v2380 = vunpack.c.l.b16 %v2252
        %v2381 = vunpack.c.l.b16 %v2253
        %v2382 = vunpack.c.l.b16 %v2254
        %v2383 = vunpack.c.l.b16 %v2255
        %v2384 = vunpack.c.l.b16 %v2256
        %v2385 = vunpack.c.l.b16 %v2257
        %v2386 = vunpack.c.l.b16 %v2258
        %v2387 = vunpack.c.l.b16 %v2259
        %v2388 = vunpack.c.l.b16 %v2260
        %v2389 = vunpack.c.l.b16 %v2261
        %v2390 = vunpack.c.l.b16 %v2262
        %v2391 = vunpack.c.l.b16 %v2263
        %v2392 = vunpack.c.l.b16 %v2264
        %v2393 = vunpack.c.l.b16 %v2265
        %v2394 = vunpack.c.l.b16 %v2266
        %v2395 = vunpack.c.l.b16 %v2267
        %v2396 = vunpack.c.l.b16 %v2268
        %v2397 = vunpack.c.l.b16 %v2269
        %v2398 = vunpack.c.l.b16 %v2270
        %v2399 = vunpack.c.l.b16 %v2271
        %v2400 = vunpack.c.l.b16 %v2272
        %v2401 = vunpack.c.l.b16 %v2273
        %v2402 = vunpack.c.l.b16 %v2274
        %v2403 = vunpack.c.l.b16 %v2275
        %v2404 = vunpack.c.l.b16 %v2276
        %v2405 = vpack.c.b16 %v2342, %v2341
        %v2406 = vpack.c.b16 %v2344, %v2343
        %v2407 = vpack.c.b16 %v2346, %v2345
        %v2408 = vpack.c.b16 %v2348, %v2347
        %v2409 = vpack.c.b16 %v2350, %v2349
        %v2410 = vpack.c.b16 %v2352, %v2351
        %v2411 = vpack.c.b16 %v2354, %v2353
        %v2412 = vpack.c.b16 %v2356, %v2355
        %v2413 = vpack.c.b16 %v2358, %v2357
        %v2414 = vpack.c.b16 %v2360, %v2359
        %v2415 = vpack.c.b16 %v2362, %v2361
        %v2416 = vpack.c.b16 %v2364, %v2363
        %v2417 = vpack.c.b16 %v2366, %v2365
        %v2418 = vpack.c.b16 %v2368, %v2367
        %v2419 = vpack.c.b16 %v2370, %v2369
        %v2420 = vpack.c.b16 %v2372, %v2371
        %v2421 = vpack.c.b16 %v2374, %v2373
        %v2422 = vpack.c.b16 %v2376, %v2375
        %v2423 = vpack.c.b16 %v2378, %v2377
        %v2424 = vpack.c.b16 %v2380, %v2379
        %v2425 = vpack.c.b16 %v2382, %v2381
        %v2426 = vpack.c.b16 %v2384, %v2383
        %v2427 = vpack.c.b16 %v2386, %v2385
        %v2428 = vpack.c.b16 %v2388, %v2387
        %v2429 = vpack.c.b16 %v2390, %v2389
        %v2430 = vpack.c.b16 %v2392, %v2391
        %v2431 = vpack.c.b16 %v2394, %v2393
        %v2432 = vpack.c.b16 %v2396, %v2395
        %v2433 = vpack.c.b16 %v2398, %v2397
        %v2434 = vpack.c.b16 %v2400, %v2399
        %v2435 = vpack.c.b16 %v2402, %v2401
        %v2436 = vpack.c.b16 %v2404, %v2403
        %2469 = vmatprep.subr.bf16.mxu0 0
        %2470 = vmatpush1.bf16.msra.mxu0 %v2412
        %2471 = vmatprep.subr.bf16.mxu0 0
        %2472 = vmatpush1.bf16.msra.mxu0 %v2411
        %2473 = vmatprep.subr.bf16.mxu0 0
        %2474 = vmatpush1.bf16.msra.mxu0 %v2410
        %2475 = vmatprep.subr.bf16.mxu0 0
        %2476 = vmatpush1.bf16.msra.mxu0 %v2409
        %2477 = vmatprep.subr.bf16.mxu0 0
        %2478 = vmatpush1.bf16.msra.mxu0 %v2408
        %2479 = vmatprep.subr.bf16.mxu0 0
        %2480 = vmatpush1.bf16.msra.mxu0 %v2407
        %2481 = vmatprep.subr.bf16.mxu0 0
        %2482 = vmatpush1.bf16.msra.mxu0 %v2406
        %2483 = vmatprep.subr.bf16.mxu0 0
        %2484 = vmatpush1.bf16.msra.mxu0 %v2405
        %2485 = vmatprep.subr.bf16.mxu0 0
        %2486 = vmatpush2.bf16.msra.mxu0 %v2420
        %2487 = vmatprep.subr.bf16.mxu0 0
        %2488 = vmatpush2.bf16.msra.mxu0 %v2419
        %2489 = vmatprep.subr.bf16.mxu0 0
        %2490 = vmatpush2.bf16.msra.mxu0 %v2418
        %2491 = vmatprep.subr.bf16.mxu0 0
        %2492 = vmatpush2.bf16.msra.mxu0 %v2417
        %2493 = vmatprep.subr.bf16.mxu0 0
        %2494 = vmatpush2.bf16.msra.mxu0 %v2416
        %2495 = vmatprep.subr.bf16.mxu0 0
        %2496 = vmatpush2.bf16.msra.mxu0 %v2415
        %2497 = vmatprep.subr.bf16.mxu0 0
        %2498 = vmatpush2.bf16.msra.mxu0 %v2414
        %2499 = vmatprep.subr.bf16.mxu0 0
        %2500 = vmatpush2.bf16.msra.mxu0 %v2413
        %2501 = vmatprep.mubr.bf16.mxu0 %v2210
        %2502 = vmatmul.mubr.bf16.gmra.mxu0 %v2209
        %v2503 = vpop.f32.mrf.mxu0
        %v2504 = vadd.f32 0.0, %v2503
        %v2505 = vpop.f32.mrf.mxu0
        %v2506 = vpop.f32.mrf.mxu0
        %v2507 = vpop.f32.mrf.mxu0
        %2508 = vdwg.mxu0
        %2509 = vmatprep.subr.bf16.mxu0 0
        %2510 = vmatpush1.bf16.msra.mxu0 %v2428
        %2511 = vmatprep.subr.bf16.mxu0 0
        %2512 = vmatpush1.bf16.msra.mxu0 %v2427
        %2513 = vmatprep.subr.bf16.mxu0 0
        %2514 = vmatpush1.bf16.msra.mxu0 %v2426
        %2515 = vmatprep.subr.bf16.mxu0 0
        %2516 = vmatpush1.bf16.msra.mxu0 %v2425
        %2517 = vmatprep.subr.bf16.mxu0 0
        %2518 = vmatpush1.bf16.msra.mxu0 %v2424
        %2519 = vmatprep.subr.bf16.mxu0 0
        %2520 = vmatpush1.bf16.msra.mxu0 %v2423
        %2521 = vmatprep.subr.bf16.mxu0 0
        %2522 = vmatpush1.bf16.msra.mxu0 %v2422
        %2523 = vmatprep.subr.bf16.mxu0 0
        %2524 = vmatpush1.bf16.msra.mxu0 %v2421
        %2525 = vmatprep.subr.bf16.mxu0 0
        %2526 = vmatpush2.bf16.msra.mxu0 %v2436
        %2527 = vmatprep.subr.bf16.mxu0 0
        %2528 = vmatpush2.bf16.msra.mxu0 %v2435
        %2529 = vmatprep.subr.bf16.mxu0 0
        %2530 = vmatpush2.bf16.msra.mxu0 %v2434
        %2531 = vmatprep.subr.bf16.mxu0 0
        %2532 = vmatpush2.bf16.msra.mxu0 %v2433
        %2533 = vmatprep.subr.bf16.mxu0 0
        %2534 = vmatpush2.bf16.msra.mxu0 %v2432
        %2535 = vmatprep.subr.bf16.mxu0 0
        %2536 = vmatpush2.bf16.msra.mxu0 %v2431
        %2537 = vmatprep.subr.bf16.mxu0 0
        %2538 = vmatpush2.bf16.msra.mxu0 %v2430
        %2539 = vmatprep.subr.bf16.mxu0 0
        %2540 = vmatpush2.bf16.msra.mxu0 %v2429
        %2541 = vmatprep.mubr.bf16.mxu0 %v2212
        %2542 = vmatmul.mubr.bf16.gmra.mxu0 %v2211
        %v2543 = vpop.f32.mrf.mxu0
        %v2544 = vadd.f32 %v2504, %v2543
        %v2545 = vpop.f32.mrf.mxu0
        %v2546 = vpop.f32.mrf.mxu0
        %v2547 = vpop.f32.mrf.mxu0
        %2548 = vdwg.mxu0
        %2549 = vst [vmem:[%s279] sm:$0xff] %v2544
        %p2550 = scmp.lt.s32.totalorder %s19, 1
        %s2551 = scalar_select %p2550, %s19, 1
        %s2552 = smul.addr %s2551, 8
        %s2553 = scalar_lea.vmem %s6, %s2552
        // Predicated region
        $region53: #{afterstate_actor_critic_forward.1} parent=43 // pred_check
          %p2554 = pneg %p168
        $region54: #{afterstate_actor_critic_forward.1} parent=43 // pred_check_branch
          %2556 = sbr.rel (%p2554) target = $region56
        $region55: #{afterstate_actor_critic_forward.1} parent=43 // pred_region
          _
        $region56: #{afterstate_actor_critic_forward.1} parent=43 // pred_fallthru
          _
      $region44: #{afterstate_actor_critic_forward.1} parent=5 // pred_fallthru
        _
      %p2557 = scmp.le.s32.totalorder 2, %s14
      // Predicated region
      $region57: #{afterstate_actor_critic_forward.1} parent=5 // pred_check
        %p2558 = pneg %p2557
      $region58: #{afterstate_actor_critic_forward.1} parent=5 // pred_check_branch
        %2560 = sbr.rel (%p2558) target = $region60
      $region59: #{afterstate_actor_critic_forward.1} parent=5 // pred_region
        %s2561 = ssub.s32 %s14, 2
        // Predicated region
        $region61: #{afterstate_actor_critic_forward.1} parent=59 // pred_check
          %p2562 = pneg %p174
        $region62: #{afterstate_actor_critic_forward.1} parent=59 // pred_check_branch
          %2564 = sbr.rel (%p2562) target = $region64
        $region63: #{afterstate_actor_critic_forward.1} parent=59 // pred_region
          %p2565 = scmp.lt.s32.totalorder %s20, 1
          %s2566 = scalar_select %p2565, %s20, 1
          %s2567 = smul.addr %s2566, 8
          %s2568 = scalar_lea.vmem %s6, %s2567
        $region64: #{afterstate_actor_critic_forward.1} parent=59 // pred_fallthru
          _
      $region60: #{afterstate_actor_critic_forward.1} parent=5 // pred_fallthru
        _
    $region6: #{afterstate_actor_critic_forward.1} parent=1 // loop_footer
      %s18 = sadd.s32 1, %s14
    $region7: #{afterstate_actor_critic_forward.1} parent=1 // loop_footer_branch
      %13 = sbr.rel target = $region3
    $region8: #{afterstate_actor_critic_forward.1} parent=1 // loop_exit
      _
    %2569 = vsyncpa [#allocation3], 1
    %s2570 = scalar_lea.sflag [#allocation3], 1
    %2571 = vsyncpa %s2570, 1
    %2572 = vsyncpa [#allocation5], 1

</llo_original>
